<compile_context>
chip_gen: v7x
topology: tpu7x:2x2x1
jax: 0.10.0
libtpu: 0.0.40
codegen_flags: <defaults>
</compile_context>

<pallas_src>
import functools
import math

import numpy as np
import jax
import jax.numpy as jnp
from jax import lax
from jax.experimental import pallas as pl
from jax.experimental.pallas import tpu as pltpu

WINDOW_SIZE = 11
SIGMA = 1.5
C1 = 0.01 ** 2
C2 = 0.03 ** 2


def gaussian_1d(window_size, sigma):
    g = [math.exp(-((x - window_size // 2) ** 2) / float(2 * sigma ** 2))
         for x in range(window_size)]
    s = sum(g)
    return [v / s for v in g]


_G1D = gaussian_1d(WINDOW_SIZE, SIGMA)


def _banded_matrix(n, g1d):
    """Banded matrix M (n, n) with M[i, o] = g[i - o + pad] (0 elsewhere), so
    (X @ M)[.., o] = sum_j g[j] * X_zeropadded[.., o + j]:  zero-padded 'same'
    1-D convolution along the last axis expressed as a right-multiplication.
    The F.conv2d(padding=window//2) zero padding is folded into the truncated
    border bands."""
    pad = len(g1d) // 2
    m = np.zeros((n, n), dtype=np.float32)
    for o in range(n):
        for j, w in enumerate(g1d):
            i = o + j - pad
            if 0 <= i < n:
                m[i, o] += w
    return m


def _ssim_kernel(img1_ref, img2_ref, gw_ref, gh_ref, psum_ref, *, B, H, W):
    x = img1_ref[...].astype(jnp.float32)            # (B, H, W)
    y = img2_ref[...].astype(jnp.float32)

    # Stack the 5 depthwise-conv operands along the (major) plane axis so that
    # each separable Gaussian pass is ONE 2-D MXU matmul.
    s = jnp.concatenate([x, y, x * x, y * y, x * y], axis=0)     # (5B, H, W)

    gw = gw_ref[...]            # (W, W): right-multiply == conv along W
    gh = gh_ref[...]            # (H, H): right-multiply == conv along H

    # Horizontal pass: single 2-D matmul (5B*H, W) @ (W, W).
    t = jnp.dot(s.reshape(5 * B * H, W), gw,
                preferred_element_type=jnp.float32).reshape(5 * B, H, W)

    # Vertical pass: transpose the minor dims once (XLU) and do a single
    # 2-D matmul (5B*W, H) @ (H, H) -- no (5B, H, H) broadcast materialized,
    # no 5B under-filled batched matmuls.
    tt = jnp.swapaxes(t, 1, 2)                                    # (5B, W, H)
    c = jnp.dot(tt.reshape(5 * B * W, H), gh,
                preferred_element_type=jnp.float32).reshape(5 * B, W, H)

    # Epilogue directly in the (plane, W, H) layout; leading-dim slices are
    # whole-tile selects and the final sum is layout-agnostic, so we never
    # transpose back.
    mu1 = c[0:B]
    mu2 = c[B:2 * B]
    mu1_sq = mu1 * mu1
    mu2_sq = mu2 * mu2
    mu1_mu2 = mu1 * mu2
    sigma1_sq = c[2 * B:3 * B] - mu1_sq
    sigma2_sq = c[3 * B:4 * B] - mu2_sq
    sigma12 = c[4 * B:5 * B] - mu1_mu2

    num = (2.0 * mu1_mu2 + C1) * (2.0 * sigma12 + C2)
    den = (mu1_sq + mu2_sq + C1) * (sigma1_sq + sigma2_sq + C2)
    # Exact divide (C1/C2 bound den away from 0); approx reciprocal would risk
    # the 1e-4 tolerance check.
    ssim_map = num / den                                          # (B, W, H)

    # Per-program partial sum, written to a lane-dense (1, 8, 128) block and
    # reduced (and normalized) in the wrapper -> no carried accumulator, so
    # the grid axis stays "parallel" (v7x 2-TC split).
    psum_ref[...] = jnp.full((1, 8, 128), jnp.sum(ssim_map), dtype=jnp.float32)


def _choose_block_planes(planes, H, W):
    """Planes per grid step: target ~1 MiB of input per step, capped by a
    ~20 MiB in-kernel working-set budget and by cdiv(planes, 2) so the
    'parallel' grid axis keeps >= 2 steps (v7x has 2 TensorCores)."""
    plane_bytes = H * W * 4
    # ~32x plane_bytes live per plane per step (x,y double-buffered + 5-plane
    # stack s/t/tt/c + epilogue temporaries).
    bp_vmem = max(1, (20 << 20) // (32 * plane_bytes))
    bp_hbm = max(1, (1 << 20) // (2 * plane_bytes))
    bp = max(1, min(bp_vmem, bp_hbm, planes, 256))
    if planes >= 2:
        bp = max(1, min(bp, -(-planes // 2)))   # keep >= 2 grid steps
    return bp


def ssim_pallas(img1, img2, window_size=WINDOW_SIZE, block_planes=None):
    """SSIM(img1, img2) with size_average=True. Inputs NCHW float32."""
    N, C, H, W = img1.shape
    planes = N * C
    bp = block_planes if block_planes is not None else _choose_block_planes(planes, H, W)
    bp = max(1, min(bp, planes))
    num_blocks = -(-planes // bp)
    planes_pad = num_blocks * bp

    g1d = gaussian_1d(window_size, SIGMA)
    gw = jnp.asarray(_banded_matrix(W, g1d))   # conv along W (right-mult)
    gh = jnp.asarray(_banded_matrix(H, g1d))   # conv along H (right-mult on transposed planes)

    x = img1.reshape(planes, H, W).astype(jnp.float32)
    y = img2.reshape(planes, H, W).astype(jnp.float32)
    if planes_pad != planes:
        # Zero-pad plane count to a multiple of bp (prime / non-divisible
        # counts no longer force bp=1).  All-zero planes give SSIM == 1.0
        # exactly; their contribution is subtracted below.
        pad = planes_pad - planes
        x = jnp.pad(x, ((0, pad), (0, 0), (0, 0)))
        y = jnp.pad(y, ((0, pad), (0, 0), (0, 0)))

    plane_bytes = H * W * 4
    vmem_est = 32 * bp * plane_bytes + 16 * (H * H + W * W) + (2 << 20)
    vmem_limit = int(min(max(vmem_est, 32 << 20), 56 << 20))

    kernel = functools.partial(_ssim_kernel, B=bp, H=H, W=W)

    psums = pl.pallas_call(
        kernel,
        out_shape=jax.ShapeDtypeStruct((num_blocks, 8, 128), jnp.float32),
        grid_spec=pltpu.PrefetchScalarGridSpec(
            num_scalar_prefetch=0,
            grid=(num_blocks,),
            in_specs=[
                pl.BlockSpec((bp, H, W), lambda g: (g, 0, 0)),
                pl.BlockSpec((bp, H, W), lambda g: (g, 0, 0)),
                # Constant index_map -> DMA'd once, stays resident.
                pl.BlockSpec((W, W), lambda g: (0, 0)),
                pl.BlockSpec((H, H), lambda g: (0, 0)),
            ],
            out_specs=pl.BlockSpec((1, 8, 128), lambda g: (g, 0, 0)),
        ),
        compiler_params=pltpu.CompilerParams(
            dimension_semantics=("parallel",),
            vmem_limit_bytes=vmem_limit),
    )(x, y, gw, gh)

    total = jnp.sum(psums[:, 0, 0])
    if planes_pad != planes:
        # Each zero-padded plane contributes exactly 1.0 * H * W.
        total = total - float((planes_pad - planes) * H * W)
    # size_average=True  ->  mean over all N*C*H*W elements.
    return total / float(planes * H * W)


def ssim_reference(img1, img2, window_size=WINDOW_SIZE):
    """Pure-JAX reference mirroring the PyTorch _ssim (depthwise conv2d)."""
    N, C, H, W = img1.shape
    g = jnp.asarray(_G1D, jnp.float32)
    w2d = jnp.outer(g, g)
    window = jnp.broadcast_to(w2d[None, None], (C, 1, window_size, window_size))
    pad = window_size // 2

    def conv(a):
        return lax.conv_general_dilated(
            a, window, window_strides=(1, 1),
            padding=[(pad, pad), (pad, pad)],
            dimension_numbers=("NCHW", "OIHW", "NCHW"),
            feature_group_count=C)

    mu1 = conv(img1)
    mu2 = conv(img2)
    mu1_sq, mu2_sq, mu1_mu2 = mu1 * mu1, mu2 * mu2, mu1 * mu2
    sigma1_sq = conv(img1 * img1) - mu1_sq
    sigma2_sq = conv(img2 * img2) - mu2_sq
    sigma12 = conv(img1 * img2) - mu1_mu2
    ssim_map = ((2 * mu1_mu2 + C1) * (2 * sigma12 + C2)) / (
        (mu1_sq + mu2_sq + C1) * (sigma1_sq + sigma2_sq + C2))
    return jnp.mean(ssim_map)


if __name__ == "__main__":
    key = jax.random.PRNGKey(0)
    k1, k2 = jax.random.split(key)
    N, C, H, W = 2, 4, 16, 16
    img1 = jax.random.uniform(k1, (N, C, H, W), dtype=jnp.float32)
    img2 = jax.random.uniform(k2, (N, C, H, W), dtype=jnp.float32)

    out = jax.block_until_ready(ssim_pallas(img1, img2))
    ref = jax.block_until_ready(ssim_reference(img1, img2))

    assert jnp.allclose(out, ref, rtol=1e-4, atol=1e-5), (out, ref)
    print("KERNEL_OK")
</pallas_src>

<mosaic_0001>
module attributes {stable_mosaic.version = 11 : i64} {
  func.func @_ssim_kernel(%arg0: i32, %arg1: memref<4x16x16xf32, #tpu.memory_space<vmem>>, %arg2: memref<4x16x16xf32, #tpu.memory_space<vmem>>, %arg3: memref<16x16xf32, #tpu.memory_space<vmem>>, %arg4: memref<16x16xf32, #tpu.memory_space<vmem>>, %arg5: memref<1x8x128xf32, #tpu.memory_space<vmem>>) attributes {dimension_semantics = [#tpu.dimension_semantics<parallel>], iteration_bounds = array<i64: 2>, scalar_prefetch = 0 : i64, scratch_operands = 0 : i64, tpu.core_type = #tpu.core_type<tc>, window_params = [{transform_indices = @transform_0, window_bounds = array<i64: 4, 16, 16>}, {transform_indices = @transform_1, window_bounds = array<i64: 4, 16, 16>}, {pipeline_mode = #tpu.pipeline_mode<synchronous>, transform_indices = @transform_2, window_bounds = array<i64: 16, 16>}, {pipeline_mode = #tpu.pipeline_mode<synchronous>, transform_indices = @transform_3, window_bounds = array<i64: 16, 16>}, {transform_indices = @transform_4, window_bounds = array<i64: 1, 8, 128>}]} {
    %c0 = arith.constant 0 : index
    %c0_0 = arith.constant 0 : index
    %c0_1 = arith.constant 0 : index
    %0 = vector.load %arg1[%c0, %c0_0, %c0_1] : memref<4x16x16xf32, #tpu.memory_space<vmem>>, vector<4x16x16xf32>
    %c0_2 = arith.constant 0 : index
    %c0_3 = arith.constant 0 : index
    %c0_4 = arith.constant 0 : index
    %1 = vector.load %arg2[%c0_2, %c0_3, %c0_4] : memref<4x16x16xf32, #tpu.memory_space<vmem>>, vector<4x16x16xf32>
    %2 = arith.mulf %0, %0 : vector<4x16x16xf32>
    %3 = arith.mulf %1, %1 : vector<4x16x16xf32>
    %4 = arith.mulf %0, %1 : vector<4x16x16xf32>
    %5 = tpu.concatenate %0, %1, %2, %3, %4 in 0 : vector<4x16x16xf32>, vector<4x16x16xf32>, vector<4x16x16xf32>, vector<4x16x16xf32>, vector<4x16x16xf32> -> vector<20x16x16xf32>
    %c0_5 = arith.constant 0 : index
    %c0_6 = arith.constant 0 : index
    %6 = vector.load %arg3[%c0_5, %c0_6] : memref<16x16xf32, #tpu.memory_space<vmem>>, vector<16x16xf32>
    %c0_7 = arith.constant 0 : index
    %c0_8 = arith.constant 0 : index
    %7 = vector.load %arg4[%c0_7, %c0_8] : memref<16x16xf32, #tpu.memory_space<vmem>>, vector<16x16xf32>
    %8 = vector.shape_cast %5 : vector<20x16x16xf32> to vector<320x16xf32>
    %cst = arith.constant dense<0.000000e+00> : vector<320x16xf32>
    %9 = tpu.matmul %8, %6, %cst {dimension_numbers = #tpu.dot_dimension_numbers<[1], [0], [0], [1], [0, 0, 1, 1], [], []>} : vector<320x16xf32>, vector<16x16xf32>, vector<320x16xf32> -> vector<320x16xf32>
    %10 = vector.shape_cast %9 : vector<320x16xf32> to vector<20x16x16xf32>
    %11 = tpu.transpose %10, [0, 2, 1] : vector<20x16x16xf32> -> vector<20x16x16xf32>
    %12 = vector.shape_cast %11 : vector<20x16x16xf32> to vector<320x16xf32>
    %cst_9 = arith.constant dense<0.000000e+00> : vector<320x16xf32>
    %13 = tpu.matmul %12, %7, %cst_9 {dimension_numbers = #tpu.dot_dimension_numbers<[1], [0], [0], [1], [0, 0, 1, 1], [], []>} : vector<320x16xf32>, vector<16x16xf32>, vector<320x16xf32> -> vector<320x16xf32>
    %14 = vector.shape_cast %13 : vector<320x16xf32> to vector<20x16x16xf32>
    %15 = vector.extract_strided_slice %14 {offsets = [0, 0, 0], sizes = [4, 16, 16], strides = [1, 1, 1]} : vector<20x16x16xf32> to vector<4x16x16xf32>
    %16 = vector.extract_strided_slice %14 {offsets = [4, 0, 0], sizes = [4, 16, 16], strides = [1, 1, 1]} : vector<20x16x16xf32> to vector<4x16x16xf32>
    %17 = arith.mulf %15, %15 : vector<4x16x16xf32>
    %18 = arith.mulf %16, %16 : vector<4x16x16xf32>
    %19 = arith.mulf %15, %16 : vector<4x16x16xf32>
    %20 = vector.extract_strided_slice %14 {offsets = [8, 0, 0], sizes = [4, 16, 16], strides = [1, 1, 1]} : vector<20x16x16xf32> to vector<4x16x16xf32>
    %21 = arith.subf %20, %17 : vector<4x16x16xf32>
    %22 = vector.extract_strided_slice %14 {offsets = [12, 0, 0], sizes = [4, 16, 16], strides = [1, 1, 1]} : vector<20x16x16xf32> to vector<4x16x16xf32>
    %23 = arith.subf %22, %18 : vector<4x16x16xf32>
    %24 = vector.extract_strided_slice %14 {offsets = [16, 0, 0], sizes = [4, 16, 16], strides = [1, 1, 1]} : vector<20x16x16xf32> to vector<4x16x16xf32>
    %25 = arith.subf %24, %19 : vector<4x16x16xf32>
    %cst_10 = arith.constant 2.000000e+00 : f32
    %26 = vector.broadcast %cst_10 : f32 to vector<4x16x16xf32>
    %27 = arith.mulf %26, %19 : vector<4x16x16xf32>
    %cst_11 = arith.constant 9.99999974E-5 : f32
    %28 = vector.broadcast %cst_11 : f32 to vector<4x16x16xf32>
    %29 = arith.addf %27, %28 : vector<4x16x16xf32>
    %cst_12 = arith.constant 2.000000e+00 : f32
    %30 = vector.broadcast %cst_12 : f32 to vector<4x16x16xf32>
    %31 = arith.mulf %30, %25 : vector<4x16x16xf32>
    %cst_13 = arith.constant 8.99999984E-4 : f32
    %32 = vector.broadcast %cst_13 : f32 to vector<4x16x16xf32>
    %33 = arith.addf %31, %32 : vector<4x16x16xf32>
    %34 = arith.mulf %29, %33 : vector<4x16x16xf32>
    %35 = arith.addf %17, %18 : vector<4x16x16xf32>
    %cst_14 = arith.constant 9.99999974E-5 : f32
    %36 = vector.broadcast %cst_14 : f32 to vector<4x16x16xf32>
    %37 = arith.addf %35, %36 : vector<4x16x16xf32>
    %38 = arith.addf %21, %23 : vector<4x16x16xf32>
    %cst_15 = arith.constant 8.99999984E-4 : f32
    %39 = vector.broadcast %cst_15 : f32 to vector<4x16x16xf32>
    %40 = arith.addf %38, %39 : vector<4x16x16xf32>
    %41 = arith.mulf %37, %40 : vector<4x16x16xf32>
    %42 = arith.divf %34, %41 : vector<4x16x16xf32>
    %43 = vector.shape_cast %42 : vector<4x16x16xf32> to vector<1x4x16x16xf32>
    %cst_16 = arith.constant dense<0.000000e+00> : vector<1xf32>
    %44 = vector.multi_reduction <add>, %43, %cst_16 [1, 2, 3] : vector<1x4x16x16xf32> to vector<1xf32>
    %45 = vector.shape_cast %44 : vector<1xf32> to vector<1x1x1x1xf32>
    %46 = vector.extract %45[0, 0, 0, 0] : f32 from vector<1x1x1x1xf32>
    %47 = vector.broadcast %46 : f32 to vector<1x8x128xf32>
    %c0_17 = arith.constant 0 : index
    %c0_18 = arith.constant 0 : index
    %c0_19 = arith.constant 0 : index
    %48 = vector.load %arg5[%c0_17, %c0_18, %c0_19] : memref<1x8x128xf32, #tpu.memory_space<vmem>>, vector<1x8x128xf32>
    tpu.vector_store %arg5[%c0_17, %c0_18, %c0_19], %47 {strides = array<i32>} : memref<1x8x128xf32, #tpu.memory_space<vmem>>, vector<1x8x128xf32>,
    return
  }
  func.func @transform_0(%arg0: i32) -> (i32, i32, i32) {
    %c0_i32 = arith.constant 0 : i32
    %c0_i32_0 = arith.constant 0 : i32
    %c0_i32_1 = arith.constant 0 : i32
    return %arg0, %c0_i32, %c0_i32_0 : i32, i32, i32
  }
  func.func @transform_1(%arg0: i32) -> (i32, i32, i32) {
    %c0_i32 = arith.constant 0 : i32
    %c0_i32_0 = arith.constant 0 : i32
    %c0_i32_1 = arith.constant 0 : i32
    return %arg0, %c0_i32, %c0_i32_0 : i32, i32, i32
  }
  func.func @transform_2(%arg0: i32) -> (i32, i32) {
    %c0_i32 = arith.constant 0 : i32
    %c0_i32_0 = arith.constant 0 : i32
    %c0_i32_1 = arith.constant 0 : i32
    return %c0_i32, %c0_i32_0 : i32, i32
  }
  func.func @transform_3(%arg0: i32) -> (i32, i32) {
    %c0_i32 = arith.constant 0 : i32
    %c0_i32_0 = arith.constant 0 : i32
    %c0_i32_1 = arith.constant 0 : i32
    return %c0_i32, %c0_i32_0 : i32, i32
  }
  func.func @transform_4(%arg0: i32) -> (i32, i32, i32) {
    %c0_i32 = arith.constant 0 : i32
    %c0_i32_0 = arith.constant 0 : i32
    %c0_i32_1 = arith.constant 0 : i32
    return %arg0, %c0_i32, %c0_i32_0 : i32, i32, i32
  }
}

</mosaic_0001>

<llo_original>
// kernel: tpu_custom_call.1
$region0: #{tpu_custom_call.1}
  #allocation0 [shape = 'u32[]', space=smem, size = 0x4, offset = 0x4, fixed_abs, tag = 'smem constant byte address 0x4 - core index']
  #allocation1 [shape = 'u32[144,128]{1,0:T(1,128)}', space=vmem, size = 0x12000, scoped, tag = 'internal scratch']
  %s0 = inlined_call_operand.hbm [shape: f32[8,16,16], index: 0, kind: input, shape index: {}]
  %s1 = inlined_call_operand.hbm [shape: f32[8,16,16], index: 1, kind: input, shape index: {}]
  %s2 = inlined_call_operand.hbm [shape: f32[16,16], index: 2, kind: input, shape index: {}]
  %s3 = inlined_call_operand.hbm [shape: f32[16,16], index: 3, kind: input, shape index: {}]
  %s4 = inlined_call_operand.hbm [shape: f32[2,8,128], index: 4, kind: output, shape index: {}]
  %s5 = sld [smem:[#allocation0]]
  $region65: #{tpu_custom_call.1} parent=0
    _
  %s7 = ssub.s32 1, %s5
  %s8 = scalar_select 0, %s7, %s5
  $region1: #{tpu_custom_call.1} parent=0
    #allocation2 [shape = 'u8[65536]{0}', space=vmem, size = 0x10000, scoped, tag = 'input window, operand 0']
    #allocation3 [shape = 's32[2]{0}', space=sflag, size = 0x8, scoped, tag = 'scoped memory for tpu_custom_call.1']
    #allocation4 [shape = 's32[2]{0}', space=sflag, size = 0x8, scoped, tag = 'scoped memory for tpu_custom_call.1']
    #allocation5 [shape = 'u8[65536]{0}', space=vmem, size = 0x10000, scoped, tag = 'input window, operand 1']
    #allocation6 [shape = 's32[2]{0}', space=sflag, size = 0x8, scoped, tag = 'scoped memory for tpu_custom_call.1']
    #allocation7 [shape = 'u8[8192]{0}', space=vmem, size = 0x2000, scoped, tag = 'input window, operand 2, single buffered']
    #allocation8 [shape = 'u8[8192]{0}', space=vmem, size = 0x2000, scoped, tag = 'input window, operand 3, single buffered']
    #allocation9 [shape = 's32[1]{0}', space=sflag, size = 0x4, scoped, tag = 'scoped memory for tpu_custom_call.1']
    #allocation10 [shape = 'u8[8192]{0}', space=vmem, size = 0x2000, scoped, tag = 'output window, operand 0']
    %9 = vsyncpa [#allocation3], 0
    %s10 = scalar_lea.sflag [#allocation3], 1
    %11 = vsyncpa %s10, 0
    %12 = vsyncpa [#allocation6], 0
    %s13 = scalar_lea.sflag [#allocation6], 1
    %14 = vsyncpa %s13, 0
    %15 = vsyncpa [#allocation9], 0
    %16 = vsyncpa [#allocation4], 0
    %s17 = scalar_lea.sflag [#allocation4], 1
    %18 = vsyncpa %s17, 0
    loop: start=0, step=1, limit=4
    $region2: #{tpu_custom_call.1} parent=1 // loop_pre_header
      _
    $region3: #{tpu_custom_call.1} parent=1 // loop_header
      %s20 = sphi 0, %s24
      %p21 = scmp.ge.s32.totalorder %s20, 4
      %s30 = sphi 0, %s32
      %s33 = sphi 0, %s30
      %s34 = sphi 0, %s33
      %s50 = sphi 0, %s34
      %s56 = sphi 0, %s58
      %s59 = sphi 0, %s56
      %s60 = sphi 0, %s59
      %s76 = sphi 0, %s60
      %s80 = sphi 0, %s80
      %s82 = sphi 0, %s80
      %s83 = sphi 0, %s82
      %s97 = sphi 0, %s83
      %s101 = sphi 0, %s101
      %s103 = sphi 0, %s101
      %s104 = sphi 0, %s103
      %s118 = sphi 0, %s104
      %s124 = sphi 0, %s126
      %s127 = sphi 0, %s124
      %s128 = sphi 0, %s127
      %s144 = sphi 0, %s128
    $region4: #{tpu_custom_call.1} parent=1 // loop_header_branch
      %23 = sbr.rel (%p21) target = $region8
    $region5: #{tpu_custom_call.1} parent=1 // loop_body
      %s25 = ssub.s32 %s20, 1
      %s26 = ssub.s32 %s20, 2
      %s27 = sadd.s32 %s20, 1
      %s28 = ssub.s32 %s20, %s27
      %p29 = scmp.eq.s32.totalorder %s28, 0
      %s31 = sadd.s32 %s30, 1
      %s32 = scalar_select %p29, %s30, %s31
      %p35 = pneg %p29
      %p36 = scmp.eq.s32.totalorder %s20, 1
      %p37 = por %p35, %p36
      %p38 = scmp.ne.s32.totalorder %s30, %s33
      %p39 = scmp.eq.s32.totalorder %s20, 0
      %p40 = por %p38, %p39
      %p41 = scmp.ne.s32.totalorder %s30, %s33
      %p42 = scmp.eq.s32.totalorder %s25, 1
      %p43 = por %p41, %p42
      %p44 = scmp.ne.s32.totalorder %s33, %s34
      %p45 = scmp.eq.s32.totalorder %s25, 0
      %p46 = por %p44, %p45
      %p47 = scmp.ne.s32.totalorder %s33, %s34
      %p48 = scmp.eq.s32.totalorder %s26, 1
      %p49 = por %p47, %p48
      %p51 = scmp.ne.s32.totalorder %s34, %s50
      %p52 = scmp.eq.s32.totalorder %s26, 0
      %p53 = por %p51, %p52
      %s54 = ssub.s32 %s20, %s27
      %p55 = scmp.eq.s32.totalorder %s54, 0
      %s57 = sadd.s32 %s56, 1
      %s58 = scalar_select %p55, %s56, %s57
      %p61 = pneg %p55
      %p62 = scmp.eq.s32.totalorder %s20, 1
      %p63 = por %p61, %p62
      %p64 = scmp.ne.s32.totalorder %s56, %s59
      %p65 = scmp.eq.s32.totalorder %s20, 0
      %p66 = por %p64, %p65
      %p67 = scmp.ne.s32.totalorder %s56, %s59
      %p68 = scmp.eq.s32.totalorder %s25, 1
      %p69 = por %p67, %p68
      %p70 = scmp.ne.s32.totalorder %s59, %s60
      %p71 = scmp.eq.s32.totalorder %s25, 0
      %p72 = por %p70, %p71
      %p73 = scmp.ne.s32.totalorder %s59, %s60
      %p74 = scmp.eq.s32.totalorder %s26, 1
      %p75 = por %p73, %p74
      %p77 = scmp.ne.s32.totalorder %s60, %s76
      %p78 = scmp.eq.s32.totalorder %s26, 0
      %p79 = por %p77, %p78
      %s81 = sadd.s32 %s80, 1
      %p84 = scmp.eq.s32.totalorder %s20, 1
      %p85 = scmp.ne.s32.totalorder %s80, %s82
      %p86 = scmp.eq.s32.totalorder %s20, 0
      %p87 = por %p85, %p86
      %p88 = scmp.ne.s32.totalorder %s80, %s82
      %p89 = scmp.eq.s32.totalorder %s25, 1
      %p90 = por %p88, %p89
      %p91 = scmp.ne.s32.totalorder %s82, %s83
      %p92 = scmp.eq.s32.totalorder %s25, 0
      %p93 = por %p91, %p92
      %p94 = scmp.ne.s32.totalorder %s82, %s83
      %p95 = scmp.eq.s32.totalorder %s26, 1
      %p96 = por %p94, %p95
      %p98 = scmp.ne.s32.totalorder %s83, %s97
      %p99 = scmp.eq.s32.totalorder %s26, 0
      %p100 = por %p98, %p99
      %s102 = sadd.s32 %s101, 1
      %p105 = scmp.eq.s32.totalorder %s20, 1
      %p106 = scmp.ne.s32.totalorder %s101, %s103
      %p107 = scmp.eq.s32.totalorder %s20, 0
      %p108 = por %p106, %p107
      %p109 = scmp.ne.s32.totalorder %s101, %s103
      %p110 = scmp.eq.s32.totalorder %s25, 1
      %p111 = por %p109, %p110
      %p112 = scmp.ne.s32.totalorder %s103, %s104
      %p113 = scmp.eq.s32.totalorder %s25, 0
      %p114 = por %p112, %p113
      %p115 = scmp.ne.s32.totalorder %s103, %s104
      %p116 = scmp.eq.s32.totalorder %s26, 1
      %p117 = por %p115, %p116
      %p119 = scmp.ne.s32.totalorder %s104, %s118
      %p120 = scmp.eq.s32.totalorder %s26, 0
      %p121 = por %p119, %p120
      %s122 = ssub.s32 %s20, %s27
      %p123 = scmp.eq.s32.totalorder %s122, 0
      %s125 = sadd.s32 %s124, 1
      %s126 = scalar_select %p123, %s124, %s125
      %p129 = pneg %p123
      %p130 = scmp.eq.s32.totalorder %s20, 1
      %p131 = por %p129, %p130
      %p132 = scmp.ne.s32.totalorder %s124, %s127
      %p133 = scmp.eq.s32.totalorder %s20, 0
      %p134 = por %p132, %p133
      %p135 = scmp.ne.s32.totalorder %s124, %s127
      %p136 = scmp.eq.s32.totalorder %s25, 1
      %p137 = por %p135, %p136
      %p138 = scmp.ne.s32.totalorder %s127, %s128
      %p139 = scmp.eq.s32.totalorder %s25, 0
      %p140 = por %p138, %p139
      %p141 = scmp.ne.s32.totalorder %s127, %s128
      %p142 = scmp.eq.s32.totalorder %s26, 1
      %p143 = por %p141, %p142
      %p145 = scmp.ne.s32.totalorder %s128, %s144
      %p146 = scmp.eq.s32.totalorder %s26, 0
      %p147 = por %p145, %p146
      %p148 = scmp.le.s32.totalorder 1, %s20
      %p149 = scmp.lt.s32.totalorder %s20, 3
      %p150 = pnand %p148, %p149
      %p151 = pneg %p150
      // Predicated region
      $region9: #{tpu_custom_call.1} parent=5 // pred_check
        _
      $region10: #{tpu_custom_call.1} parent=5 // pred_check_branch
        %153 = sbr.rel (%p150) target = $region12
      $region11: #{tpu_custom_call.1} parent=5 // pred_region
        %s154 = ssub.s32 %s20, 1
        // Predicated region
        $region13: #{tpu_custom_call.1} parent=11 // pred_check
          %p155 = pneg %p93
        $region14: #{tpu_custom_call.1} parent=11 // pred_check_branch
          %157 = sbr.rel (%p155) target = $region16
        $region15: #{tpu_custom_call.1} parent=11 // pred_region
          %s159 = ssub.s32 256, 256
          %160 = vsyncadd [#allocation6], %s159
          %s161 = sshll.u32 [#allocation7], 4
          %s162 = int_to_ptr.vmem [resolvable:$true] %s161
          %167 = dma.hbm_to_vmem [thread:$0]  %s2, 256, %s162, [#allocation6], 128, 128, 8
        $region16: #{tpu_custom_call.1} parent=11 // pred_fallthru
          _
        // Predicated region
        $region17: #{tpu_custom_call.1} parent=11 // pred_check
          %p168 = pneg %p114
        $region18: #{tpu_custom_call.1} parent=11 // pred_check_branch
          %170 = sbr.rel (%p168) target = $region20
        $region19: #{tpu_custom_call.1} parent=11 // pred_region
          %s172 = ssub.s32 256, 256
          %173 = vsyncadd [#allocation9], %s172
          %s174 = sshll.u32 [#allocation8], 4
          %s175 = int_to_ptr.vmem [resolvable:$true] %s174
          %180 = dma.hbm_to_vmem [thread:$0]  %s3, 256, %s175, [#allocation9], 128, 128, 8
        $region20: #{tpu_custom_call.1} parent=11 // pred_fallthru
          _
      $region12: #{tpu_custom_call.1} parent=5 // pred_fallthru
        _
      %p181 = scmp.lt.s32.totalorder %s20, 2
      // Predicated region
      $region21: #{tpu_custom_call.1} parent=5 // pred_check
        %p182 = pneg %p181
      $region22: #{tpu_custom_call.1} parent=5 // pred_check_branch
        %184 = sbr.rel (%p182) target = $region24
      $region23: #{tpu_custom_call.1} parent=5 // pred_region
        // Predicated region
        $region25: #{tpu_custom_call.1} parent=23 // pred_check
          %p185 = pneg %p40
        $region26: #{tpu_custom_call.1} parent=23 // pred_check_branch
          %187 = sbr.rel (%p185) target = $region28
        $region27: #{tpu_custom_call.1} parent=23 // pred_region
          %s188 = sand.u32 %s30, 1
          %s189 = scalar_lea.sflag [#allocation3], %s188
          %s190 = sand.u32 %s30, 1
          %s191 = smul.addr %s190, 64
          %s192 = scalar_lea.vmem [#allocation2], %s191
          %s193 = smul.u32 4, %s20
          %s195 = ssub.s32 1024, 1024
          %196 = vsyncadd %s189, %s195
          %s197 = smul.addr %s193, 2
          %s198 = smul.addr %s197, 128
          %s199 = scalar_lea.hbm %s0, %s198
          %s200 = sshll.u32 %s192, 4
          %s201 = int_to_ptr.vmem [resolvable:$true] %s200
          %206 = dma.hbm_to_vmem [thread:$0]  %s199, 1024, %s201, %s189, 128, 128, 8
        $region28: #{tpu_custom_call.1} parent=23 // pred_fallthru
          _
        // Predicated region
        $region29: #{tpu_custom_call.1} parent=23 // pred_check
          %p207 = pneg %p66
        $region30: #{tpu_custom_call.1} parent=23 // pred_check_branch
          %209 = sbr.rel (%p207) target = $region32
        $region31: #{tpu_custom_call.1} parent=23 // pred_region
          %s210 = sand.u32 %s20, 1
          %s211 = scalar_lea.sflag [#allocation6], %s210
          %s212 = sand.u32 %s56, 1
          %s213 = smul.addr %s212, 64
          %s214 = scalar_lea.vmem [#allocation5], %s213
          %s215 = smul.u32 4, %s20
          %s217 = ssub.s32 1024, 1024
          %218 = vsyncadd %s211, %s217
          %s219 = smul.addr %s215, 2
          %s220 = smul.addr %s219, 128
          %s221 = scalar_lea.hbm %s1, %s220
          %s222 = sshll.u32 %s214, 4
          %s223 = int_to_ptr.vmem [resolvable:$true] %s222
          %228 = dma.hbm_to_vmem [thread:$0]  %s221, 1024, %s223, %s211, 128, 128, 8
        $region32: #{tpu_custom_call.1} parent=23 // pred_fallthru
          _
      $region24: #{tpu_custom_call.1} parent=5 // pred_fallthru
        _
      %p229 = scmp.le.s32.totalorder 1, %s20
      %p230 = scmp.lt.s32.totalorder %s20, 3
      %p231 = pnand %p229, %p230
      %p232 = pneg %p231
      // Predicated region
      $region33: #{tpu_custom_call.1} parent=5 // pred_check
        _
      $region34: #{tpu_custom_call.1} parent=5 // pred_check_branch
        %234 = sbr.rel (%p231) target = $region36
      $region35: #{tpu_custom_call.1} parent=5 // pred_region
        %s235 = ssub.s32 %s20, 1
        %s236 = sand.u32 %s33, 1
        %s237 = scalar_lea.sflag [#allocation3], %s236
        %s238 = sand.u32 %s33, 1
        %s239 = smul.addr %s238, 64
        %s240 = scalar_lea.vmem [#allocation2], %s239
        // Predicated region
        $region37: #{tpu_custom_call.1} parent=35 // pred_check
          %p241 = pneg %p46
        $region38: #{tpu_custom_call.1} parent=35 // pred_check_branch
          %243 = sbr.rel (%p241) target = $region40
        $region39: #{tpu_custom_call.1} parent=35 // pred_region
          %244 = dma.done %s237, 1024
        $region40: #{tpu_custom_call.1} parent=35 // pred_fallthru
          _
        %s245 = sand.u32 %s25, 1
        %s246 = scalar_lea.sflag [#allocation6], %s245
        %s247 = sand.u32 %s59, 1
        %s248 = smul.addr %s247, 64
        %s249 = scalar_lea.vmem [#allocation5], %s248
        // Predicated region
        $region41: #{tpu_custom_call.1} parent=35 // pred_check
          %p250 = pneg %p72
        $region42: #{tpu_custom_call.1} parent=35 // pred_check_branch
          %252 = sbr.rel (%p250) target = $region44
        $region43: #{tpu_custom_call.1} parent=35 // pred_region
          %253 = dma.done %s246, 1024
        $region44: #{tpu_custom_call.1} parent=35 // pred_fallthru
          _
        // Predicated region
        $region45: #{tpu_custom_call.1} parent=35 // pred_check
          %p254 = pneg %p93
        $region46: #{tpu_custom_call.1} parent=35 // pred_check_branch
          %256 = sbr.rel (%p254) target = $region48
        $region47: #{tpu_custom_call.1} parent=35 // pred_region
          %257 = dma.done [#allocation6], 256
        $region48: #{tpu_custom_call.1} parent=35 // pred_fallthru
          _
        // Predicated region
        $region49: #{tpu_custom_call.1} parent=35 // pred_check
          %p258 = pneg %p114
        $region50: #{tpu_custom_call.1} parent=35 // pred_check_branch
          %260 = sbr.rel (%p258) target = $region52
        $region51: #{tpu_custom_call.1} parent=35 // pred_region
          %261 = dma.done [#allocation9], 256
        $region52: #{tpu_custom_call.1} parent=35 // pred_fallthru
          _
        %s262 = sand.u32 %s33, 1
        %s263 = scalar_lea.sflag [#allocation3], %s262
        %s264 = sand.u32 %s33, 1
        %s265 = smul.addr %s264, 64
        %s266 = scalar_lea.vmem [#allocation2], %s265
        %p267 = pneg %p46
        %p268 = pneg %p43
        %s269 = sand.u32 %s25, 1
        %s270 = scalar_lea.sflag [#allocation6], %s269
        %s271 = sand.u32 %s59, 1
        %s272 = smul.addr %s271, 64
        %s273 = scalar_lea.vmem [#allocation5], %s272
        %p274 = pneg %p72
        %p275 = pneg %p69
        %p276 = pneg %p93
        %p277 = pneg %p90
        %p278 = pneg %p114
        %p279 = pneg %p111
        %p280 = pneg %p140
        %p281 = pneg %p137
        %s282 = sand.u32 %s127, 1
        %s283 = scalar_lea.sflag [#allocation4], %s282
        %s284 = sand.u32 %s127, 1
        %s285 = smul.addr %s284, 8
        %s286 = scalar_lea.vmem [#allocation10], %s285
        %s287 = smul.u32 4, %s25
        %s288 = smul.u32 4, %s25
        %v289 = vld [vmem:[%s240] sm:$0xff]
        %v290 = vld [vmem:[%s240 + $0x8] sm:$0xff]
        %v291 = vld [vmem:[%s240 + $0x10] sm:$0xff]
        %v292 = vld [vmem:[%s240 + $0x18] sm:$0xff]
        %v293 = vld [vmem:[%s240 + $0x20] sm:$0xff]
        %v294 = vld [vmem:[%s240 + $0x28] sm:$0xff]
        %v295 = vld [vmem:[%s240 + $0x30] sm:$0xff]
        %v296 = vld [vmem:[%s240 + $0x38] sm:$0xff]
        %v297 = vld [vmem:[%s249] sm:$0xff]
        %v298 = vld [vmem:[%s249 + $0x8] sm:$0xff]
        %v299 = vld [vmem:[%s249 + $0x10] sm:$0xff]
        %v300 = vld [vmem:[%s249 + $0x18] sm:$0xff]
        %v301 = vld [vmem:[%s249 + $0x20] sm:$0xff]
        %v302 = vld [vmem:[%s249 + $0x28] sm:$0xff]
        %v303 = vld [vmem:[%s249 + $0x30] sm:$0xff]
        %v304 = vld [vmem:[%s249 + $0x38] sm:$0xff]
        %v305 = vmul.f32 %v289, %v289
        %v306 = vmul.f32 %v290, %v290
        %v307 = vmul.f32 %v291, %v291
        %v308 = vmul.f32 %v292, %v292
        %v309 = vmul.f32 %v293, %v293
        %v310 = vmul.f32 %v294, %v294
        %v311 = vmul.f32 %v295, %v295
        %v312 = vmul.f32 %v296, %v296
        %v313 = vmul.f32 %v297, %v297
        %v314 = vmul.f32 %v298, %v298
        %v315 = vmul.f32 %v299, %v299
        %v316 = vmul.f32 %v300, %v300
        %v317 = vmul.f32 %v301, %v301
        %v318 = vmul.f32 %v302, %v302
        %v319 = vmul.f32 %v303, %v303
        %v320 = vmul.f32 %v304, %v304
        %v321 = vmul.f32 %v289, %v297
        %v322 = vmul.f32 %v290, %v298
        %v323 = vmul.f32 %v291, %v299
        %v324 = vmul.f32 %v292, %v300
        %v325 = vmul.f32 %v293, %v301
        %v326 = vmul.f32 %v294, %v302
        %v327 = vmul.f32 %v295, %v303
        %v328 = vmul.f32 %v296, %v304
        %v329 = vld [vmem:[#allocation7] sm:$0xff]
        %v330 = vld [vmem:[#allocation7 + $0x8] sm:$0xff]
        %v331 = vld [vmem:[#allocation8] sm:$0xff]
        %v332 = vld [vmem:[#allocation8 + $0x8] sm:$0xff]
        %vm333 = vcmask 130048
        %v335 = vsel %vm333, %v289, 0
        %v338 = vsel %vm333, %v290, 0
        %v341 = vsel %vm333, %v291, 0
        %v344 = vsel %vm333, %v292, 0
        %v347 = vsel %vm333, %v293, 0
        %v350 = vsel %vm333, %v294, 0
        %v353 = vsel %vm333, %v295, 0
        %v356 = vsel %vm333, %v296, 0
        %v359 = vsel %vm333, %v297, 0
        %v362 = vsel %vm333, %v298, 0
        %v365 = vsel %vm333, %v299, 0
        %v368 = vsel %vm333, %v300, 0
        %v371 = vsel %vm333, %v301, 0
        %v374 = vsel %vm333, %v302, 0
        %v377 = vsel %vm333, %v303, 0
        %v380 = vsel %vm333, %v304, 0
        %v383 = vsel %vm333, %v305, 0
        %v386 = vsel %vm333, %v306, 0
        %v389 = vsel %vm333, %v307, 0
        %v392 = vsel %vm333, %v308, 0
        %v395 = vsel %vm333, %v309, 0
        %v398 = vsel %vm333, %v310, 0
        %v401 = vsel %vm333, %v311, 0
        %v404 = vsel %vm333, %v312, 0
        %v407 = vsel %vm333, %v313, 0
        %v410 = vsel %vm333, %v314, 0
        %v413 = vsel %vm333, %v315, 0
        %v416 = vsel %vm333, %v316, 0
        %v419 = vsel %vm333, %v317, 0
        %v422 = vsel %vm333, %v318, 0
        %v425 = vsel %vm333, %v319, 0
        %v428 = vsel %vm333, %v320, 0
        %v431 = vsel %vm333, %v321, 0
        %v434 = vsel %vm333, %v322, 0
        %v437 = vsel %vm333, %v323, 0
        %v440 = vsel %vm333, %v324, 0
        %v443 = vsel %vm333, %v325, 0
        %v446 = vsel %vm333, %v326, 0
        %v449 = vsel %vm333, %v327, 0
        %v452 = vsel %vm333, %v328, 0
        %454 = vmatprep.subr.mxu0 0.0
        %455 = vmatpush1.msra.mxu0 %v329
        %456 = vmatprep.subr.mxu0 0.0
        %457 = vmatpush1.msra.mxu0 %v330
        %458 = vmatprep.subr.mxu0 0.0
        %459 = vmatpush1.msra.mxu0 0.0
        %460 = vmatprep.subr.mxu0 0.0
        %461 = vmatpush1.msra.mxu0 0.0
        %462 = vmatprep.subr.mxu0 0.0
        %463 = vmatpush1.msra.mxu0 0.0
        %464 = vmatprep.subr.mxu0 0.0
        %465 = vmatpush1.msra.mxu0 0.0
        %466 = vmatprep.subr.mxu0 0.0
        %467 = vmatpush1.msra.mxu0 0.0
        %468 = vmatprep.subr.mxu0 0.0
        %469 = vmatpush1.msra.mxu0 0.0
        %470 = vmatprep.subr.mxu0 0.0
        %471 = vmatpush1.msra.mxu0 0.0
        %472 = vmatprep.subr.mxu0 0.0
        %473 = vmatpush1.msra.mxu0 0.0
        %474 = vmatprep.subr.mxu0 0.0
        %475 = vmatpush1.msra.mxu0 0.0
        %476 = vmatprep.subr.mxu0 0.0
        %477 = vmatpush1.msra.mxu0 0.0
        %478 = vmatprep.subr.mxu0 0.0
        %479 = vmatpush1.msra.mxu0 0.0
        %480 = vmatprep.subr.mxu0 0.0
        %481 = vmatpush1.msra.mxu0 0.0
        %482 = vmatprep.subr.mxu0 0.0
        %483 = vmatpush1.msra.mxu0 0.0
        %484 = vmatprep.subr.mxu0 0.0
        %485 = vmatpush1.msra.mxu0 0.0
        %486 = vmatprep.subr.mxu0 0.0
        %487 = vmatpush1.msra.mxu0 0.0
        %488 = vmatprep.subr.mxu0 0.0
        %489 = vmatpush1.msra.mxu0 0.0
        %490 = vmatprep.subr.mxu0 0.0
        %491 = vmatpush1.msra.mxu0 0.0
        %492 = vmatprep.subr.mxu0 0.0
        %493 = vmatpush1.msra.mxu0 0.0
        %494 = vmatprep.subr.mxu0 0.0
        %495 = vmatpush1.msra.mxu0 0.0
        %496 = vmatprep.subr.mxu0 0.0
        %497 = vmatpush1.msra.mxu0 0.0
        %498 = vmatprep.subr.mxu0 0.0
        %499 = vmatpush1.msra.mxu0 0.0
        %500 = vmatprep.subr.mxu0 0.0
        %501 = vmatpush1.msra.mxu0 0.0
        %502 = vmatprep.subr.mxu0 0.0
        %503 = vmatpush1.msra.mxu0 0.0
        %504 = vmatprep.subr.mxu0 0.0
        %505 = vmatpush1.msra.mxu0 0.0
        %506 = vmatprep.subr.mxu0 0.0
        %507 = vmatpush1.msra.mxu0 0.0
        %508 = vmatprep.subr.mxu0 0.0
        %509 = vmatpush1.msra.mxu0 0.0
        %510 = vmatprep.subr.mxu0 0.0
        %511 = vmatpush1.msra.mxu0 0.0
        %512 = vmatprep.subr.mxu0 0.0
        %513 = vmatpush1.msra.mxu0 0.0
        %514 = vmatprep.subr.mxu0 0.0
        %515 = vmatpush1.msra.mxu0 0.0
        %516 = vmatprep.subr.mxu0 0.0
        %517 = vmatpush1.msra.mxu0 0.0
        %518 = vmatprep.mubr.f32.mxu0 0.0
        %519 = vmatmul.mubr.f32.gmra.mrb[0].mxu0 %v335
        %v520 = vpop.f32.mrb[0].mxu0
        %v521 = vadd.f32 0.0, %v520
        %v522 = vpop.f32.mrb[0].mxu0
        %523 = vmatprep.mubr.f32.mxu0 0.0
        %524 = vmatmul.mubr.f32.gmra.mrb[0].mxu0 %v338
        %v525 = vpop.f32.mrb[0].mxu0
        %v526 = vadd.f32 0.0, %v525
        %v527 = vpop.f32.mrb[0].mxu0
        %528 = vmatprep.mubr.f32.mxu0 0.0
        %529 = vmatmul.mubr.f32.gmra.mrb[0].mxu0 %v341
        %v530 = vpop.f32.mrb[0].mxu0
        %v531 = vadd.f32 0.0, %v530
        %v532 = vpop.f32.mrb[0].mxu0
        %533 = vmatprep.mubr.f32.mxu0 0.0
        %534 = vmatmul.mubr.f32.gmra.mrb[0].mxu0 %v344
        %v535 = vpop.f32.mrb[0].mxu0
        %v536 = vadd.f32 0.0, %v535
        %v537 = vpop.f32.mrb[0].mxu0
        %538 = vmatprep.mubr.f32.mxu0 0.0
        %539 = vmatmul.mubr.f32.gmra.mrb[0].mxu0 %v347
        %v540 = vpop.f32.mrb[0].mxu0
        %v541 = vadd.f32 0.0, %v540
        %v542 = vpop.f32.mrb[0].mxu0
        %543 = vmatprep.mubr.f32.mxu0 0.0
        %544 = vmatmul.mubr.f32.gmra.mrb[0].mxu0 %v350
        %v545 = vpop.f32.mrb[0].mxu0
        %v546 = vadd.f32 0.0, %v545
        %v547 = vpop.f32.mrb[0].mxu0
        %548 = vmatprep.mubr.f32.mxu0 0.0
        %549 = vmatmul.mubr.f32.gmra.mrb[0].mxu0 %v353
        %v550 = vpop.f32.mrb[0].mxu0
        %v551 = vadd.f32 0.0, %v550
        %v552 = vpop.f32.mrb[0].mxu0
        %553 = vmatprep.mubr.f32.mxu0 0.0
        %554 = vmatmul.mubr.f32.gmra.mrb[0].mxu0 %v356
        %v555 = vpop.f32.mrb[0].mxu0
        %v556 = vadd.f32 0.0, %v555
        %v557 = vpop.f32.mrb[0].mxu0
        %558 = vmatprep.mubr.f32.mxu0 0.0
        %559 = vmatmul.mubr.f32.gmra.mrb[0].mxu0 %v359
        %v560 = vpop.f32.mrb[0].mxu0
        %v561 = vadd.f32 0.0, %v560
        %v562 = vpop.f32.mrb[0].mxu0
        %563 = vmatprep.mubr.f32.mxu0 0.0
        %564 = vmatmul.mubr.f32.gmra.mrb[0].mxu0 %v362
        %v565 = vpop.f32.mrb[0].mxu0
        %v566 = vadd.f32 0.0, %v565
        %v567 = vpop.f32.mrb[0].mxu0
        %568 = vmatprep.mubr.f32.mxu0 0.0
        %569 = vmatmul.mubr.f32.gmra.mrb[0].mxu0 %v365
        %v570 = vpop.f32.mrb[0].mxu0
        %v571 = vadd.f32 0.0, %v570
        %v572 = vpop.f32.mrb[0].mxu0
        %573 = vmatprep.mubr.f32.mxu0 0.0
        %574 = vmatmul.mubr.f32.gmra.mrb[0].mxu0 %v368
        %v575 = vpop.f32.mrb[0].mxu0
        %v576 = vadd.f32 0.0, %v575
        %v577 = vpop.f32.mrb[0].mxu0
        %578 = vmatprep.mubr.f32.mxu0 0.0
        %579 = vmatmul.mubr.f32.gmra.mrb[0].mxu0 %v371
        %v580 = vpop.f32.mrb[0].mxu0
        %v581 = vadd.f32 0.0, %v580
        %v582 = vpop.f32.mrb[0].mxu0
        %583 = vmatprep.mubr.f32.mxu0 0.0
        %584 = vmatmul.mubr.f32.gmra.mrb[0].mxu0 %v374
        %v585 = vpop.f32.mrb[0].mxu0
        %v586 = vadd.f32 0.0, %v585
        %v587 = vpop.f32.mrb[0].mxu0
        %588 = vmatprep.mubr.f32.mxu0 0.0
        %589 = vmatmul.mubr.f32.gmra.mrb[0].mxu0 %v377
        %v590 = vpop.f32.mrb[0].mxu0
        %v591 = vadd.f32 0.0, %v590
        %v592 = vpop.f32.mrb[0].mxu0
        %593 = vmatprep.mubr.f32.mxu0 0.0
        %594 = vmatmul.mubr.f32.gmra.mrb[0].mxu0 %v380
        %v595 = vpop.f32.mrb[0].mxu0
        %v596 = vadd.f32 0.0, %v595
        %v597 = vpop.f32.mrb[0].mxu0
        %598 = vmatprep.mubr.f32.mxu0 0.0
        %599 = vmatmul.mubr.f32.gmra.mrb[0].mxu0 %v383
        %v600 = vpop.f32.mrb[0].mxu0
        %v601 = vadd.f32 0.0, %v600
        %v602 = vpop.f32.mrb[0].mxu0
        %603 = vmatprep.mubr.f32.mxu0 0.0
        %604 = vmatmul.mubr.f32.gmra.mrb[0].mxu0 %v386
        %v605 = vpop.f32.mrb[0].mxu0
        %v606 = vadd.f32 0.0, %v605
        %v607 = vpop.f32.mrb[0].mxu0
        %608 = vmatprep.mubr.f32.mxu0 0.0
        %609 = vmatmul.mubr.f32.gmra.mrb[0].mxu0 %v389
        %v610 = vpop.f32.mrb[0].mxu0
        %v611 = vadd.f32 0.0, %v610
        %v612 = vpop.f32.mrb[0].mxu0
        %613 = vmatprep.mubr.f32.mxu0 0.0
        %614 = vmatmul.mubr.f32.gmra.mrb[0].mxu0 %v392
        %v615 = vpop.f32.mrb[0].mxu0
        %v616 = vadd.f32 0.0, %v615
        %v617 = vpop.f32.mrb[0].mxu0
        %618 = vmatprep.mubr.f32.mxu0 0.0
        %619 = vmatmul.mubr.f32.gmra.mrb[0].mxu0 %v395
        %v620 = vpop.f32.mrb[0].mxu0
        %v621 = vadd.f32 0.0, %v620
        %v622 = vpop.f32.mrb[0].mxu0
        %623 = vmatprep.mubr.f32.mxu0 0.0
        %624 = vmatmul.mubr.f32.gmra.mrb[0].mxu0 %v398
        %v625 = vpop.f32.mrb[0].mxu0
        %v626 = vadd.f32 0.0, %v625
        %v627 = vpop.f32.mrb[0].mxu0
        %628 = vmatprep.mubr.f32.mxu0 0.0
        %629 = vmatmul.mubr.f32.gmra.mrb[0].mxu0 %v401
        %v630 = vpop.f32.mrb[0].mxu0
        %v631 = vadd.f32 0.0, %v630
        %v632 = vpop.f32.mrb[0].mxu0
        %633 = vmatprep.mubr.f32.mxu0 0.0
        %634 = vmatmul.mubr.f32.gmra.mrb[0].mxu0 %v404
        %v635 = vpop.f32.mrb[0].mxu0
        %v636 = vadd.f32 0.0, %v635
        %v637 = vpop.f32.mrb[0].mxu0
        %638 = vmatprep.mubr.f32.mxu0 0.0
        %639 = vmatmul.mubr.f32.gmra.mrb[0].mxu0 %v407
        %v640 = vpop.f32.mrb[0].mxu0
        %v641 = vadd.f32 0.0, %v640
        %v642 = vpop.f32.mrb[0].mxu0
        %643 = vmatprep.mubr.f32.mxu0 0.0
        %644 = vmatmul.mubr.f32.gmra.mrb[0].mxu0 %v410
        %v645 = vpop.f32.mrb[0].mxu0
        %v646 = vadd.f32 0.0, %v645
        %v647 = vpop.f32.mrb[0].mxu0
        %648 = vmatprep.mubr.f32.mxu0 0.0
        %649 = vmatmul.mubr.f32.gmra.mrb[0].mxu0 %v413
        %v650 = vpop.f32.mrb[0].mxu0
        %v651 = vadd.f32 0.0, %v650
        %v652 = vpop.f32.mrb[0].mxu0
        %653 = vmatprep.mubr.f32.mxu0 0.0
        %654 = vmatmul.mubr.f32.gmra.mrb[0].mxu0 %v416
        %v655 = vpop.f32.mrb[0].mxu0
        %v656 = vadd.f32 0.0, %v655
        %v657 = vpop.f32.mrb[0].mxu0
        %658 = vmatprep.mubr.f32.mxu0 0.0
        %659 = vmatmul.mubr.f32.gmra.mrb[0].mxu0 %v419
        %v660 = vpop.f32.mrb[0].mxu0
        %v661 = vadd.f32 0.0, %v660
        %v662 = vpop.f32.mrb[0].mxu0
        %663 = vmatprep.mubr.f32.mxu0 0.0
        %664 = vmatmul.mubr.f32.gmra.mrb[0].mxu0 %v422
        %v665 = vpop.f32.mrb[0].mxu0
        %v666 = vadd.f32 0.0, %v665
        %v667 = vpop.f32.mrb[0].mxu0
        %668 = vmatprep.mubr.f32.mxu0 0.0
        %669 = vmatmul.mubr.f32.gmra.mrb[0].mxu0 %v425
        %v670 = vpop.f32.mrb[0].mxu0
        %v671 = vadd.f32 0.0, %v670
        %v672 = vpop.f32.mrb[0].mxu0
        %673 = vmatprep.mubr.f32.mxu0 0.0
        %674 = vmatmul.mubr.f32.gmra.mrb[0].mxu0 %v428
        %v675 = vpop.f32.mrb[0].mxu0
        %v676 = vadd.f32 0.0, %v675
        %v677 = vpop.f32.mrb[0].mxu0
        %678 = vmatprep.mubr.f32.mxu0 0.0
        %679 = vmatmul.mubr.f32.gmra.mrb[0].mxu0 %v431
        %v680 = vpop.f32.mrb[0].mxu0
        %v681 = vadd.f32 0.0, %v680
        %v682 = vpop.f32.mrb[0].mxu0
        %683 = vmatprep.mubr.f32.mxu0 0.0
        %684 = vmatmul.mubr.f32.gmra.mrb[0].mxu0 %v434
        %v685 = vpop.f32.mrb[0].mxu0
        %v686 = vadd.f32 0.0, %v685
        %v687 = vpop.f32.mrb[0].mxu0
        %688 = vmatprep.mubr.f32.mxu0 0.0
        %689 = vmatmul.mubr.f32.gmra.mrb[0].mxu0 %v437
        %v690 = vpop.f32.mrb[0].mxu0
        %v691 = vadd.f32 0.0, %v690
        %v692 = vpop.f32.mrb[0].mxu0
        %693 = vmatprep.mubr.f32.mxu0 0.0
        %694 = vmatmul.mubr.f32.gmra.mrb[0].mxu0 %v440
        %v695 = vpop.f32.mrb[0].mxu0
        %v696 = vadd.f32 0.0, %v695
        %v697 = vpop.f32.mrb[0].mxu0
        %698 = vmatprep.mubr.f32.mxu0 0.0
        %699 = vmatmul.mubr.f32.gmra.mrb[0].mxu0 %v443
        %v700 = vpop.f32.mrb[0].mxu0
        %v701 = vadd.f32 0.0, %v700
        %v702 = vpop.f32.mrb[0].mxu0
        %703 = vmatprep.mubr.f32.mxu0 0.0
        %704 = vmatmul.mubr.f32.gmra.mrb[0].mxu0 %v446
        %v705 = vpop.f32.mrb[0].mxu0
        %v706 = vadd.f32 0.0, %v705
        %v707 = vpop.f32.mrb[0].mxu0
        %708 = vmatprep.mubr.f32.mxu0 0.0
        %709 = vmatmul.mubr.f32.gmra.mrb[0].mxu0 %v449
        %v710 = vpop.f32.mrb[0].mxu0
        %v711 = vadd.f32 0.0, %v710
        %v712 = vpop.f32.mrb[0].mxu0
        %713 = vmatprep.mubr.f32.mxu0 0.0
        %714 = vmatmul.mubr.f32.gmra.mrb[0].mxu0 %v452
        %v715 = vpop.f32.mrb[0].mxu0
        %v716 = vadd.f32 0.0, %v715
        %v717 = vpop.f32.mrb[0].mxu0
        %718 = vdwg.mxu0
        %719 = vxpose.xlu0.b32.start [1/16] %v521, 128
        %720 = vxpose.xlu0.b32.cont [2/16] %v526, 128
        %721 = vxpose.xlu0.b32.cont [3/16] 0.0, 128
        %722 = vxpose.xlu0.b32.cont [4/16] 0.0, 128
        %723 = vxpose.xlu0.b32.cont [5/16] 0.0, 128
        %724 = vxpose.xlu0.b32.cont [6/16] 0.0, 128
        %725 = vxpose.xlu0.b32.cont [7/16] 0.0, 128
        %726 = vxpose.xlu0.b32.cont [8/16] 0.0, 128
        %727 = vxpose.xlu0.b32.cont [9/16] 0.0, 128
        %728 = vxpose.xlu0.b32.cont [10/16] 0.0, 128
        %729 = vxpose.xlu0.b32.cont [11/16] 0.0, 128
        %730 = vxpose.xlu0.b32.cont [12/16] 0.0, 128
        %731 = vxpose.xlu0.b32.cont [13/16] 0.0, 128
        %732 = vxpose.xlu0.b32.cont [14/16] 0.0, 128
        %733 = vxpose.xlu0.b32.cont [15/16] 0.0, 128
        %734 = vxpose.xlu0.b32.end [16/16] 0.0, 128
        %v735 = vpop.trf.xlu0
        %v736 = vpop.trf.xlu0
        %v737 = vpop.trf.xlu0
        %v738 = vpop.trf.xlu0
        %v739 = vpop.trf.xlu0
        %v740 = vpop.trf.xlu0
        %v741 = vpop.trf.xlu0
        %v742 = vpop.trf.xlu0
        %v743 = vpop.trf.xlu0
        %v744 = vpop.trf.xlu0
        %v745 = vpop.trf.xlu0
        %v746 = vpop.trf.xlu0
        %v747 = vpop.trf.xlu0
        %v748 = vpop.trf.xlu0
        %v749 = vpop.trf.xlu0
        %v750 = vpop.trf.xlu0
        %751 = vxpose.xlu0.b32.start [1/16] %v531, 128
        %752 = vxpose.xlu0.b32.cont [2/16] %v536, 128
        %753 = vxpose.xlu0.b32.cont [3/16] 0.0, 128
        %754 = vxpose.xlu0.b32.cont [4/16] 0.0, 128
        %755 = vxpose.xlu0.b32.cont [5/16] 0.0, 128
        %756 = vxpose.xlu0.b32.cont [6/16] 0.0, 128
        %757 = vxpose.xlu0.b32.cont [7/16] 0.0, 128
        %758 = vxpose.xlu0.b32.cont [8/16] 0.0, 128
        %759 = vxpose.xlu0.b32.cont [9/16] 0.0, 128
        %760 = vxpose.xlu0.b32.cont [10/16] 0.0, 128
        %761 = vxpose.xlu0.b32.cont [11/16] 0.0, 128
        %762 = vxpose.xlu0.b32.cont [12/16] 0.0, 128
        %763 = vxpose.xlu0.b32.cont [13/16] 0.0, 128
        %764 = vxpose.xlu0.b32.cont [14/16] 0.0, 128
        %765 = vxpose.xlu0.b32.cont [15/16] 0.0, 128
        %766 = vxpose.xlu0.b32.end [16/16] 0.0, 128
        %v767 = vpop.trf.xlu0
        %v768 = vpop.trf.xlu0
        %v769 = vpop.trf.xlu0
        %v770 = vpop.trf.xlu0
        %v771 = vpop.trf.xlu0
        %v772 = vpop.trf.xlu0
        %v773 = vpop.trf.xlu0
        %v774 = vpop.trf.xlu0
        %v775 = vpop.trf.xlu0
        %v776 = vpop.trf.xlu0
        %v777 = vpop.trf.xlu0
        %v778 = vpop.trf.xlu0
        %v779 = vpop.trf.xlu0
        %v780 = vpop.trf.xlu0
        %v781 = vpop.trf.xlu0
        %v782 = vpop.trf.xlu0
        %783 = vxpose.xlu0.b32.start [1/16] %v541, 128
        %784 = vxpose.xlu0.b32.cont [2/16] %v546, 128
        %785 = vxpose.xlu0.b32.cont [3/16] 0.0, 128
        %786 = vxpose.xlu0.b32.cont [4/16] 0.0, 128
        %787 = vxpose.xlu0.b32.cont [5/16] 0.0, 128
        %788 = vxpose.xlu0.b32.cont [6/16] 0.0, 128
        %789 = vxpose.xlu0.b32.cont [7/16] 0.0, 128
        %790 = vxpose.xlu0.b32.cont [8/16] 0.0, 128
        %791 = vxpose.xlu0.b32.cont [9/16] 0.0, 128
        %792 = vxpose.xlu0.b32.cont [10/16] 0.0, 128
        %793 = vxpose.xlu0.b32.cont [11/16] 0.0, 128
        %794 = vxpose.xlu0.b32.cont [12/16] 0.0, 128
        %795 = vxpose.xlu0.b32.cont [13/16] 0.0, 128
        %796 = vxpose.xlu0.b32.cont [14/16] 0.0, 128
        %797 = vxpose.xlu0.b32.cont [15/16] 0.0, 128
        %798 = vxpose.xlu0.b32.end [16/16] 0.0, 128
        %v799 = vpop.trf.xlu0
        %v800 = vpop.trf.xlu0
        %v801 = vpop.trf.xlu0
        %v802 = vpop.trf.xlu0
        %v803 = vpop.trf.xlu0
        %v804 = vpop.trf.xlu0
        %v805 = vpop.trf.xlu0
        %v806 = vpop.trf.xlu0
        %v807 = vpop.trf.xlu0
        %v808 = vpop.trf.xlu0
        %v809 = vpop.trf.xlu0
        %v810 = vpop.trf.xlu0
        %v811 = vpop.trf.xlu0
        %v812 = vpop.trf.xlu0
        %v813 = vpop.trf.xlu0
        %v814 = vpop.trf.xlu0
        %815 = vxpose.xlu0.b32.start [1/16] %v551, 128
        %816 = vxpose.xlu0.b32.cont [2/16] %v556, 128
        %817 = vxpose.xlu0.b32.cont [3/16] 0.0, 128
        %818 = vxpose.xlu0.b32.cont [4/16] 0.0, 128
        %819 = vxpose.xlu0.b32.cont [5/16] 0.0, 128
        %820 = vxpose.xlu0.b32.cont [6/16] 0.0, 128
        %821 = vxpose.xlu0.b32.cont [7/16] 0.0, 128
        %822 = vxpose.xlu0.b32.cont [8/16] 0.0, 128
        %823 = vxpose.xlu0.b32.cont [9/16] 0.0, 128
        %824 = vxpose.xlu0.b32.cont [10/16] 0.0, 128
        %825 = vxpose.xlu0.b32.cont [11/16] 0.0, 128
        %826 = vxpose.xlu0.b32.cont [12/16] 0.0, 128
        %827 = vxpose.xlu0.b32.cont [13/16] 0.0, 128
        %828 = vxpose.xlu0.b32.cont [14/16] 0.0, 128
        %829 = vxpose.xlu0.b32.cont [15/16] 0.0, 128
        %830 = vxpose.xlu0.b32.end [16/16] 0.0, 128
        %v831 = vpop.trf.xlu0
        %v832 = vpop.trf.xlu0
        %v833 = vpop.trf.xlu0
        %v834 = vpop.trf.xlu0
        %v835 = vpop.trf.xlu0
        %v836 = vpop.trf.xlu0
        %v837 = vpop.trf.xlu0
        %v838 = vpop.trf.xlu0
        %v839 = vpop.trf.xlu0
        %v840 = vpop.trf.xlu0
        %v841 = vpop.trf.xlu0
        %v842 = vpop.trf.xlu0
        %v843 = vpop.trf.xlu0
        %v844 = vpop.trf.xlu0
        %v845 = vpop.trf.xlu0
        %v846 = vpop.trf.xlu0
        %847 = vxpose.xlu0.b32.start [1/16] %v561, 128
        %848 = vxpose.xlu0.b32.cont [2/16] %v566, 128
        %849 = vxpose.xlu0.b32.cont [3/16] 0.0, 128
        %850 = vxpose.xlu0.b32.cont [4/16] 0.0, 128
        %851 = vxpose.xlu0.b32.cont [5/16] 0.0, 128
        %852 = vxpose.xlu0.b32.cont [6/16] 0.0, 128
        %853 = vxpose.xlu0.b32.cont [7/16] 0.0, 128
        %854 = vxpose.xlu0.b32.cont [8/16] 0.0, 128
        %855 = vxpose.xlu0.b32.cont [9/16] 0.0, 128
        %856 = vxpose.xlu0.b32.cont [10/16] 0.0, 128
        %857 = vxpose.xlu0.b32.cont [11/16] 0.0, 128
        %858 = vxpose.xlu0.b32.cont [12/16] 0.0, 128
        %859 = vxpose.xlu0.b32.cont [13/16] 0.0, 128
        %860 = vxpose.xlu0.b32.cont [14/16] 0.0, 128
        %861 = vxpose.xlu0.b32.cont [15/16] 0.0, 128
        %862 = vxpose.xlu0.b32.end [16/16] 0.0, 128
        %v863 = vpop.trf.xlu0
        %v864 = vpop.trf.xlu0
        %v865 = vpop.trf.xlu0
        %v866 = vpop.trf.xlu0
        %v867 = vpop.trf.xlu0
        %v868 = vpop.trf.xlu0
        %v869 = vpop.trf.xlu0
        %v870 = vpop.trf.xlu0
        %v871 = vpop.trf.xlu0
        %v872 = vpop.trf.xlu0
        %v873 = vpop.trf.xlu0
        %v874 = vpop.trf.xlu0
        %v875 = vpop.trf.xlu0
        %v876 = vpop.trf.xlu0
        %v877 = vpop.trf.xlu0
        %v878 = vpop.trf.xlu0
        %879 = vxpose.xlu0.b32.start [1/16] %v571, 128
        %880 = vxpose.xlu0.b32.cont [2/16] %v576, 128
        %881 = vxpose.xlu0.b32.cont [3/16] 0.0, 128
        %882 = vxpose.xlu0.b32.cont [4/16] 0.0, 128
        %883 = vxpose.xlu0.b32.cont [5/16] 0.0, 128
        %884 = vxpose.xlu0.b32.cont [6/16] 0.0, 128
        %885 = vxpose.xlu0.b32.cont [7/16] 0.0, 128
        %886 = vxpose.xlu0.b32.cont [8/16] 0.0, 128
        %887 = vxpose.xlu0.b32.cont [9/16] 0.0, 128
        %888 = vxpose.xlu0.b32.cont [10/16] 0.0, 128
        %889 = vxpose.xlu0.b32.cont [11/16] 0.0, 128
        %890 = vxpose.xlu0.b32.cont [12/16] 0.0, 128
        %891 = vxpose.xlu0.b32.cont [13/16] 0.0, 128
        %892 = vxpose.xlu0.b32.cont [14/16] 0.0, 128
        %893 = vxpose.xlu0.b32.cont [15/16] 0.0, 128
        %894 = vxpose.xlu0.b32.end [16/16] 0.0, 128
        %v895 = vpop.trf.xlu0
        %v896 = vpop.trf.xlu0
        %v897 = vpop.trf.xlu0
        %v898 = vpop.trf.xlu0
        %v899 = vpop.trf.xlu0
        %v900 = vpop.trf.xlu0
        %v901 = vpop.trf.xlu0
        %v902 = vpop.trf.xlu0
        %v903 = vpop.trf.xlu0
        %v904 = vpop.trf.xlu0
        %v905 = vpop.trf.xlu0
        %v906 = vpop.trf.xlu0
        %v907 = vpop.trf.xlu0
        %v908 = vpop.trf.xlu0
        %v909 = vpop.trf.xlu0
        %v910 = vpop.trf.xlu0
        %911 = vxpose.xlu0.b32.start [1/16] %v581, 128
        %912 = vxpose.xlu0.b32.cont [2/16] %v586, 128
        %913 = vxpose.xlu0.b32.cont [3/16] 0.0, 128
        %914 = vxpose.xlu0.b32.cont [4/16] 0.0, 128
        %915 = vxpose.xlu0.b32.cont [5/16] 0.0, 128
        %916 = vxpose.xlu0.b32.cont [6/16] 0.0, 128
        %917 = vxpose.xlu0.b32.cont [7/16] 0.0, 128
        %918 = vxpose.xlu0.b32.cont [8/16] 0.0, 128
        %919 = vxpose.xlu0.b32.cont [9/16] 0.0, 128
        %920 = vxpose.xlu0.b32.cont [10/16] 0.0, 128
        %921 = vxpose.xlu0.b32.cont [11/16] 0.0, 128
        %922 = vxpose.xlu0.b32.cont [12/16] 0.0, 128
        %923 = vxpose.xlu0.b32.cont [13/16] 0.0, 128
        %924 = vxpose.xlu0.b32.cont [14/16] 0.0, 128
        %925 = vxpose.xlu0.b32.cont [15/16] 0.0, 128
        %926 = vxpose.xlu0.b32.end [16/16] 0.0, 128
        %v927 = vpop.trf.xlu0
        %v928 = vpop.trf.xlu0
        %v929 = vpop.trf.xlu0
        %v930 = vpop.trf.xlu0
        %v931 = vpop.trf.xlu0
        %v932 = vpop.trf.xlu0
        %v933 = vpop.trf.xlu0
        %v934 = vpop.trf.xlu0
        %v935 = vpop.trf.xlu0
        %v936 = vpop.trf.xlu0
        %v937 = vpop.trf.xlu0
        %v938 = vpop.trf.xlu0
        %v939 = vpop.trf.xlu0
        %v940 = vpop.trf.xlu0
        %v941 = vpop.trf.xlu0
        %v942 = vpop.trf.xlu0
        %943 = vxpose.xlu0.b32.start [1/16] %v591, 128
        %944 = vxpose.xlu0.b32.cont [2/16] %v596, 128
        %945 = vxpose.xlu0.b32.cont [3/16] 0.0, 128
        %946 = vxpose.xlu0.b32.cont [4/16] 0.0, 128
        %947 = vxpose.xlu0.b32.cont [5/16] 0.0, 128
        %948 = vxpose.xlu0.b32.cont [6/16] 0.0, 128
        %949 = vxpose.xlu0.b32.cont [7/16] 0.0, 128
        %950 = vxpose.xlu0.b32.cont [8/16] 0.0, 128
        %951 = vxpose.xlu0.b32.cont [9/16] 0.0, 128
        %952 = vxpose.xlu0.b32.cont [10/16] 0.0, 128
        %953 = vxpose.xlu0.b32.cont [11/16] 0.0, 128
        %954 = vxpose.xlu0.b32.cont [12/16] 0.0, 128
        %955 = vxpose.xlu0.b32.cont [13/16] 0.0, 128
        %956 = vxpose.xlu0.b32.cont [14/16] 0.0, 128
        %957 = vxpose.xlu0.b32.cont [15/16] 0.0, 128
        %958 = vxpose.xlu0.b32.end [16/16] 0.0, 128
        %v959 = vpop.trf.xlu0
        %v960 = vpop.trf.xlu0
        %v961 = vpop.trf.xlu0
        %v962 = vpop.trf.xlu0
        %v963 = vpop.trf.xlu0
        %v964 = vpop.trf.xlu0
        %v965 = vpop.trf.xlu0
        %v966 = vpop.trf.xlu0
        %v967 = vpop.trf.xlu0
        %v968 = vpop.trf.xlu0
        %v969 = vpop.trf.xlu0
        %v970 = vpop.trf.xlu0
        %v971 = vpop.trf.xlu0
        %v972 = vpop.trf.xlu0
        %v973 = vpop.trf.xlu0
        %v974 = vpop.trf.xlu0
        %975 = vxpose.xlu0.b32.start [1/16] %v601, 128
        %976 = vxpose.xlu0.b32.cont [2/16] %v606, 128
        %977 = vxpose.xlu0.b32.cont [3/16] 0.0, 128
        %978 = vxpose.xlu0.b32.cont [4/16] 0.0, 128
        %979 = vxpose.xlu0.b32.cont [5/16] 0.0, 128
        %980 = vxpose.xlu0.b32.cont [6/16] 0.0, 128
        %981 = vxpose.xlu0.b32.cont [7/16] 0.0, 128
        %982 = vxpose.xlu0.b32.cont [8/16] 0.0, 128
        %983 = vxpose.xlu0.b32.cont [9/16] 0.0, 128
        %984 = vxpose.xlu0.b32.cont [10/16] 0.0, 128
        %985 = vxpose.xlu0.b32.cont [11/16] 0.0, 128
        %986 = vxpose.xlu0.b32.cont [12/16] 0.0, 128
        %987 = vxpose.xlu0.b32.cont [13/16] 0.0, 128
        %988 = vxpose.xlu0.b32.cont [14/16] 0.0, 128
        %989 = vxpose.xlu0.b32.cont [15/16] 0.0, 128
        %990 = vxpose.xlu0.b32.end [16/16] 0.0, 128
        %v991 = vpop.trf.xlu0
        %v992 = vpop.trf.xlu0
        %v993 = vpop.trf.xlu0
        %v994 = vpop.trf.xlu0
        %v995 = vpop.trf.xlu0
        %v996 = vpop.trf.xlu0
        %v997 = vpop.trf.xlu0
        %v998 = vpop.trf.xlu0
        %v999 = vpop.trf.xlu0
        %v1000 = vpop.trf.xlu0
        %v1001 = vpop.trf.xlu0
        %v1002 = vpop.trf.xlu0
        %v1003 = vpop.trf.xlu0
        %v1004 = vpop.trf.xlu0
        %v1005 = vpop.trf.xlu0
        %v1006 = vpop.trf.xlu0
        %1007 = vxpose.xlu0.b32.start [1/16] %v611, 128
        %1008 = vxpose.xlu0.b32.cont [2/16] %v616, 128
        %1009 = vxpose.xlu0.b32.cont [3/16] 0.0, 128
        %1010 = vxpose.xlu0.b32.cont [4/16] 0.0, 128
        %1011 = vxpose.xlu0.b32.cont [5/16] 0.0, 128
        %1012 = vxpose.xlu0.b32.cont [6/16] 0.0, 128
        %1013 = vxpose.xlu0.b32.cont [7/16] 0.0, 128
        %1014 = vxpose.xlu0.b32.cont [8/16] 0.0, 128
        %1015 = vxpose.xlu0.b32.cont [9/16] 0.0, 128
        %1016 = vxpose.xlu0.b32.cont [10/16] 0.0, 128
        %1017 = vxpose.xlu0.b32.cont [11/16] 0.0, 128
        %1018 = vxpose.xlu0.b32.cont [12/16] 0.0, 128
        %1019 = vxpose.xlu0.b32.cont [13/16] 0.0, 128
        %1020 = vxpose.xlu0.b32.cont [14/16] 0.0, 128
        %1021 = vxpose.xlu0.b32.cont [15/16] 0.0, 128
        %1022 = vxpose.xlu0.b32.end [16/16] 0.0, 128
        %v1023 = vpop.trf.xlu0
        %v1024 = vpop.trf.xlu0
        %v1025 = vpop.trf.xlu0
        %v1026 = vpop.trf.xlu0
        %v1027 = vpop.trf.xlu0
        %v1028 = vpop.trf.xlu0
        %v1029 = vpop.trf.xlu0
        %v1030 = vpop.trf.xlu0
        %v1031 = vpop.trf.xlu0
        %v1032 = vpop.trf.xlu0
        %v1033 = vpop.trf.xlu0
        %v1034 = vpop.trf.xlu0
        %v1035 = vpop.trf.xlu0
        %v1036 = vpop.trf.xlu0
        %v1037 = vpop.trf.xlu0
        %v1038 = vpop.trf.xlu0
        %1039 = vxpose.xlu0.b32.start [1/16] %v621, 128
        %1040 = vxpose.xlu0.b32.cont [2/16] %v626, 128
        %1041 = vxpose.xlu0.b32.cont [3/16] 0.0, 128
        %1042 = vxpose.xlu0.b32.cont [4/16] 0.0, 128
        %1043 = vxpose.xlu0.b32.cont [5/16] 0.0, 128
        %1044 = vxpose.xlu0.b32.cont [6/16] 0.0, 128
        %1045 = vxpose.xlu0.b32.cont [7/16] 0.0, 128
        %1046 = vxpose.xlu0.b32.cont [8/16] 0.0, 128
        %1047 = vxpose.xlu0.b32.cont [9/16] 0.0, 128
        %1048 = vxpose.xlu0.b32.cont [10/16] 0.0, 128
        %1049 = vxpose.xlu0.b32.cont [11/16] 0.0, 128
        %1050 = vxpose.xlu0.b32.cont [12/16] 0.0, 128
        %1051 = vxpose.xlu0.b32.cont [13/16] 0.0, 128
        %1052 = vxpose.xlu0.b32.cont [14/16] 0.0, 128
        %1053 = vxpose.xlu0.b32.cont [15/16] 0.0, 128
        %1054 = vxpose.xlu0.b32.end [16/16] 0.0, 128
        %v1055 = vpop.trf.xlu0
        %v1056 = vpop.trf.xlu0
        %v1057 = vpop.trf.xlu0
        %v1058 = vpop.trf.xlu0
        %v1059 = vpop.trf.xlu0
        %v1060 = vpop.trf.xlu0
        %v1061 = vpop.trf.xlu0
        %v1062 = vpop.trf.xlu0
        %v1063 = vpop.trf.xlu0
        %v1064 = vpop.trf.xlu0
        %v1065 = vpop.trf.xlu0
        %v1066 = vpop.trf.xlu0
        %v1067 = vpop.trf.xlu0
        %v1068 = vpop.trf.xlu0
        %v1069 = vpop.trf.xlu0
        %v1070 = vpop.trf.xlu0
        %1071 = vxpose.xlu0.b32.start [1/16] %v631, 128
        %1072 = vxpose.xlu0.b32.cont [2/16] %v636, 128
        %1073 = vxpose.xlu0.b32.cont [3/16] 0.0, 128
        %1074 = vxpose.xlu0.b32.cont [4/16] 0.0, 128
        %1075 = vxpose.xlu0.b32.cont [5/16] 0.0, 128
        %1076 = vxpose.xlu0.b32.cont [6/16] 0.0, 128
        %1077 = vxpose.xlu0.b32.cont [7/16] 0.0, 128
        %1078 = vxpose.xlu0.b32.cont [8/16] 0.0, 128
        %1079 = vxpose.xlu0.b32.cont [9/16] 0.0, 128
        %1080 = vxpose.xlu0.b32.cont [10/16] 0.0, 128
        %1081 = vxpose.xlu0.b32.cont [11/16] 0.0, 128
        %1082 = vxpose.xlu0.b32.cont [12/16] 0.0, 128
        %1083 = vxpose.xlu0.b32.cont [13/16] 0.0, 128
        %1084 = vxpose.xlu0.b32.cont [14/16] 0.0, 128
        %1085 = vxpose.xlu0.b32.cont [15/16] 0.0, 128
        %1086 = vxpose.xlu0.b32.end [16/16] 0.0, 128
        %v1087 = vpop.trf.xlu0
        %v1088 = vpop.trf.xlu0
        %v1089 = vpop.trf.xlu0
        %v1090 = vpop.trf.xlu0
        %v1091 = vpop.trf.xlu0
        %v1092 = vpop.trf.xlu0
        %v1093 = vpop.trf.xlu0
        %v1094 = vpop.trf.xlu0
        %v1095 = vpop.trf.xlu0
        %v1096 = vpop.trf.xlu0
        %v1097 = vpop.trf.xlu0
        %v1098 = vpop.trf.xlu0
        %v1099 = vpop.trf.xlu0
        %v1100 = vpop.trf.xlu0
        %v1101 = vpop.trf.xlu0
        %v1102 = vpop.trf.xlu0
        %1103 = vxpose.xlu0.b32.start [1/16] %v641, 128
        %1104 = vxpose.xlu0.b32.cont [2/16] %v646, 128
        %1105 = vxpose.xlu0.b32.cont [3/16] 0.0, 128
        %1106 = vxpose.xlu0.b32.cont [4/16] 0.0, 128
        %1107 = vxpose.xlu0.b32.cont [5/16] 0.0, 128
        %1108 = vxpose.xlu0.b32.cont [6/16] 0.0, 128
        %1109 = vxpose.xlu0.b32.cont [7/16] 0.0, 128
        %1110 = vxpose.xlu0.b32.cont [8/16] 0.0, 128
        %1111 = vxpose.xlu0.b32.cont [9/16] 0.0, 128
        %1112 = vxpose.xlu0.b32.cont [10/16] 0.0, 128
        %1113 = vxpose.xlu0.b32.cont [11/16] 0.0, 128
        %1114 = vxpose.xlu0.b32.cont [12/16] 0.0, 128
        %1115 = vxpose.xlu0.b32.cont [13/16] 0.0, 128
        %1116 = vxpose.xlu0.b32.cont [14/16] 0.0, 128
        %1117 = vxpose.xlu0.b32.cont [15/16] 0.0, 128
        %1118 = vxpose.xlu0.b32.end [16/16] 0.0, 128
        %v1119 = vpop.trf.xlu0
        %v1120 = vpop.trf.xlu0
        %v1121 = vpop.trf.xlu0
        %v1122 = vpop.trf.xlu0
        %v1123 = vpop.trf.xlu0
        %v1124 = vpop.trf.xlu0
        %v1125 = vpop.trf.xlu0
        %v1126 = vpop.trf.xlu0
        %v1127 = vpop.trf.xlu0
        %v1128 = vpop.trf.xlu0
        %v1129 = vpop.trf.xlu0
        %v1130 = vpop.trf.xlu0
        %v1131 = vpop.trf.xlu0
        %v1132 = vpop.trf.xlu0
        %v1133 = vpop.trf.xlu0
        %v1134 = vpop.trf.xlu0
        %1135 = vxpose.xlu0.b32.start [1/16] %v651, 128
        %1136 = vxpose.xlu0.b32.cont [2/16] %v656, 128
        %1137 = vxpose.xlu0.b32.cont [3/16] 0.0, 128
        %1138 = vxpose.xlu0.b32.cont [4/16] 0.0, 128
        %1139 = vxpose.xlu0.b32.cont [5/16] 0.0, 128
        %1140 = vxpose.xlu0.b32.cont [6/16] 0.0, 128
        %1141 = vxpose.xlu0.b32.cont [7/16] 0.0, 128
        %1142 = vxpose.xlu0.b32.cont [8/16] 0.0, 128
        %1143 = vxpose.xlu0.b32.cont [9/16] 0.0, 128
        %1144 = vxpose.xlu0.b32.cont [10/16] 0.0, 128
        %1145 = vxpose.xlu0.b32.cont [11/16] 0.0, 128
        %1146 = vxpose.xlu0.b32.cont [12/16] 0.0, 128
        %1147 = vxpose.xlu0.b32.cont [13/16] 0.0, 128
        %1148 = vxpose.xlu0.b32.cont [14/16] 0.0, 128
        %1149 = vxpose.xlu0.b32.cont [15/16] 0.0, 128
        %1150 = vxpose.xlu0.b32.end [16/16] 0.0, 128
        %v1151 = vpop.trf.xlu0
        %v1152 = vpop.trf.xlu0
        %v1153 = vpop.trf.xlu0
        %v1154 = vpop.trf.xlu0
        %v1155 = vpop.trf.xlu0
        %v1156 = vpop.trf.xlu0
        %v1157 = vpop.trf.xlu0
        %v1158 = vpop.trf.xlu0
        %v1159 = vpop.trf.xlu0
        %v1160 = vpop.trf.xlu0
        %v1161 = vpop.trf.xlu0
        %v1162 = vpop.trf.xlu0
        %v1163 = vpop.trf.xlu0
        %v1164 = vpop.trf.xlu0
        %v1165 = vpop.trf.xlu0
        %v1166 = vpop.trf.xlu0
        %1167 = vxpose.xlu0.b32.start [1/16] %v661, 128
        %1168 = vxpose.xlu0.b32.cont [2/16] %v666, 128
        %1169 = vxpose.xlu0.b32.cont [3/16] 0.0, 128
        %1170 = vxpose.xlu0.b32.cont [4/16] 0.0, 128
        %1171 = vxpose.xlu0.b32.cont [5/16] 0.0, 128
        %1172 = vxpose.xlu0.b32.cont [6/16] 0.0, 128
        %1173 = vxpose.xlu0.b32.cont [7/16] 0.0, 128
        %1174 = vxpose.xlu0.b32.cont [8/16] 0.0, 128
        %1175 = vxpose.xlu0.b32.cont [9/16] 0.0, 128
        %1176 = vxpose.xlu0.b32.cont [10/16] 0.0, 128
        %1177 = vxpose.xlu0.b32.cont [11/16] 0.0, 128
        %1178 = vxpose.xlu0.b32.cont [12/16] 0.0, 128
        %1179 = vxpose.xlu0.b32.cont [13/16] 0.0, 128
        %1180 = vxpose.xlu0.b32.cont [14/16] 0.0, 128
        %1181 = vxpose.xlu0.b32.cont [15/16] 0.0, 128
        %1182 = vxpose.xlu0.b32.end [16/16] 0.0, 128
        %v1183 = vpop.trf.xlu0
        %v1184 = vpop.trf.xlu0
        %v1185 = vpop.trf.xlu0
        %v1186 = vpop.trf.xlu0
        %v1187 = vpop.trf.xlu0
        %v1188 = vpop.trf.xlu0
        %v1189 = vpop.trf.xlu0
        %v1190 = vpop.trf.xlu0
        %v1191 = vpop.trf.xlu0
        %v1192 = vpop.trf.xlu0
        %v1193 = vpop.trf.xlu0
        %v1194 = vpop.trf.xlu0
        %v1195 = vpop.trf.xlu0
        %v1196 = vpop.trf.xlu0
        %v1197 = vpop.trf.xlu0
        %v1198 = vpop.trf.xlu0
        %1199 = vxpose.xlu0.b32.start [1/16] %v671, 128
        %1200 = vxpose.xlu0.b32.cont [2/16] %v676, 128
        %1201 = vxpose.xlu0.b32.cont [3/16] 0.0, 128
        %1202 = vxpose.xlu0.b32.cont [4/16] 0.0, 128
        %1203 = vxpose.xlu0.b32.cont [5/16] 0.0, 128
        %1204 = vxpose.xlu0.b32.cont [6/16] 0.0, 128
        %1205 = vxpose.xlu0.b32.cont [7/16] 0.0, 128
        %1206 = vxpose.xlu0.b32.cont [8/16] 0.0, 128
        %1207 = vxpose.xlu0.b32.cont [9/16] 0.0, 128
        %1208 = vxpose.xlu0.b32.cont [10/16] 0.0, 128
        %1209 = vxpose.xlu0.b32.cont [11/16] 0.0, 128
        %1210 = vxpose.xlu0.b32.cont [12/16] 0.0, 128
        %1211 = vxpose.xlu0.b32.cont [13/16] 0.0, 128
        %1212 = vxpose.xlu0.b32.cont [14/16] 0.0, 128
        %1213 = vxpose.xlu0.b32.cont [15/16] 0.0, 128
        %1214 = vxpose.xlu0.b32.end [16/16] 0.0, 128
        %v1215 = vpop.trf.xlu0
        %v1216 = vpop.trf.xlu0
        %v1217 = vpop.trf.xlu0
        %v1218 = vpop.trf.xlu0
        %v1219 = vpop.trf.xlu0
        %v1220 = vpop.trf.xlu0
        %v1221 = vpop.trf.xlu0
        %v1222 = vpop.trf.xlu0
        %v1223 = vpop.trf.xlu0
        %v1224 = vpop.trf.xlu0
        %v1225 = vpop.trf.xlu0
        %v1226 = vpop.trf.xlu0
        %v1227 = vpop.trf.xlu0
        %v1228 = vpop.trf.xlu0
        %v1229 = vpop.trf.xlu0
        %v1230 = vpop.trf.xlu0
        %1231 = vxpose.xlu0.b32.start [1/16] %v681, 128
        %1232 = vxpose.xlu0.b32.cont [2/16] %v686, 128
        %1233 = vxpose.xlu0.b32.cont [3/16] 0.0, 128
        %1234 = vxpose.xlu0.b32.cont [4/16] 0.0, 128
        %1235 = vxpose.xlu0.b32.cont [5/16] 0.0, 128
        %1236 = vxpose.xlu0.b32.cont [6/16] 0.0, 128
        %1237 = vxpose.xlu0.b32.cont [7/16] 0.0, 128
        %1238 = vxpose.xlu0.b32.cont [8/16] 0.0, 128
        %1239 = vxpose.xlu0.b32.cont [9/16] 0.0, 128
        %1240 = vxpose.xlu0.b32.cont [10/16] 0.0, 128
        %1241 = vxpose.xlu0.b32.cont [11/16] 0.0, 128
        %1242 = vxpose.xlu0.b32.cont [12/16] 0.0, 128
        %1243 = vxpose.xlu0.b32.cont [13/16] 0.0, 128
        %1244 = vxpose.xlu0.b32.cont [14/16] 0.0, 128
        %1245 = vxpose.xlu0.b32.cont [15/16] 0.0, 128
        %1246 = vxpose.xlu0.b32.end [16/16] 0.0, 128
        %v1247 = vpop.trf.xlu0
        %v1248 = vpop.trf.xlu0
        %v1249 = vpop.trf.xlu0
        %v1250 = vpop.trf.xlu0
        %v1251 = vpop.trf.xlu0
        %v1252 = vpop.trf.xlu0
        %v1253 = vpop.trf.xlu0
        %v1254 = vpop.trf.xlu0
        %v1255 = vpop.trf.xlu0
        %v1256 = vpop.trf.xlu0
        %v1257 = vpop.trf.xlu0
        %v1258 = vpop.trf.xlu0
        %v1259 = vpop.trf.xlu0
        %v1260 = vpop.trf.xlu0
        %v1261 = vpop.trf.xlu0
        %v1262 = vpop.trf.xlu0
        %1263 = vxpose.xlu0.b32.start [1/16] %v691, 128
        %1264 = vxpose.xlu0.b32.cont [2/16] %v696, 128
        %1265 = vxpose.xlu0.b32.cont [3/16] 0.0, 128
        %1266 = vxpose.xlu0.b32.cont [4/16] 0.0, 128
        %1267 = vxpose.xlu0.b32.cont [5/16] 0.0, 128
        %1268 = vxpose.xlu0.b32.cont [6/16] 0.0, 128
        %1269 = vxpose.xlu0.b32.cont [7/16] 0.0, 128
        %1270 = vxpose.xlu0.b32.cont [8/16] 0.0, 128
        %1271 = vxpose.xlu0.b32.cont [9/16] 0.0, 128
        %1272 = vxpose.xlu0.b32.cont [10/16] 0.0, 128
        %1273 = vxpose.xlu0.b32.cont [11/16] 0.0, 128
        %1274 = vxpose.xlu0.b32.cont [12/16] 0.0, 128
        %1275 = vxpose.xlu0.b32.cont [13/16] 0.0, 128
        %1276 = vxpose.xlu0.b32.cont [14/16] 0.0, 128
        %1277 = vxpose.xlu0.b32.cont [15/16] 0.0, 128
        %1278 = vxpose.xlu0.b32.end [16/16] 0.0, 128
        %v1279 = vpop.trf.xlu0
        %v1280 = vpop.trf.xlu0
        %v1281 = vpop.trf.xlu0
        %v1282 = vpop.trf.xlu0
        %v1283 = vpop.trf.xlu0
        %v1284 = vpop.trf.xlu0
        %v1285 = vpop.trf.xlu0
        %v1286 = vpop.trf.xlu0
        %v1287 = vpop.trf.xlu0
        %v1288 = vpop.trf.xlu0
        %v1289 = vpop.trf.xlu0
        %v1290 = vpop.trf.xlu0
        %v1291 = vpop.trf.xlu0
        %v1292 = vpop.trf.xlu0
        %v1293 = vpop.trf.xlu0
        %v1294 = vpop.trf.xlu0
        %1295 = vxpose.xlu0.b32.start [1/16] %v701, 128
        %1296 = vxpose.xlu0.b32.cont [2/16] %v706, 128
        %1297 = vxpose.xlu0.b32.cont [3/16] 0.0, 128
        %1298 = vxpose.xlu0.b32.cont [4/16] 0.0, 128
        %1299 = vxpose.xlu0.b32.cont [5/16] 0.0, 128
        %1300 = vxpose.xlu0.b32.cont [6/16] 0.0, 128
        %1301 = vxpose.xlu0.b32.cont [7/16] 0.0, 128
        %1302 = vxpose.xlu0.b32.cont [8/16] 0.0, 128
        %1303 = vxpose.xlu0.b32.cont [9/16] 0.0, 128
        %1304 = vxpose.xlu0.b32.cont [10/16] 0.0, 128
        %1305 = vxpose.xlu0.b32.cont [11/16] 0.0, 128
        %1306 = vxpose.xlu0.b32.cont [12/16] 0.0, 128
        %1307 = vxpose.xlu0.b32.cont [13/16] 0.0, 128
        %1308 = vxpose.xlu0.b32.cont [14/16] 0.0, 128
        %1309 = vxpose.xlu0.b32.cont [15/16] 0.0, 128
        %1310 = vxpose.xlu0.b32.end [16/16] 0.0, 128
        %v1311 = vpop.trf.xlu0
        %v1312 = vpop.trf.xlu0
        %v1313 = vpop.trf.xlu0
        %v1314 = vpop.trf.xlu0
        %v1315 = vpop.trf.xlu0
        %v1316 = vpop.trf.xlu0
        %v1317 = vpop.trf.xlu0
        %v1318 = vpop.trf.xlu0
        %v1319 = vpop.trf.xlu0
        %v1320 = vpop.trf.xlu0
        %v1321 = vpop.trf.xlu0
        %v1322 = vpop.trf.xlu0
        %v1323 = vpop.trf.xlu0
        %v1324 = vpop.trf.xlu0
        %v1325 = vpop.trf.xlu0
        %v1326 = vpop.trf.xlu0
        %1327 = vxpose.xlu0.b32.start [1/16] %v711, 128
        %1328 = vxpose.xlu0.b32.cont [2/16] %v716, 128
        %1329 = vxpose.xlu0.b32.cont [3/16] 0.0, 128
        %1330 = vxpose.xlu0.b32.cont [4/16] 0.0, 128
        %1331 = vxpose.xlu0.b32.cont [5/16] 0.0, 128
        %1332 = vxpose.xlu0.b32.cont [6/16] 0.0, 128
        %1333 = vxpose.xlu0.b32.cont [7/16] 0.0, 128
        %1334 = vxpose.xlu0.b32.cont [8/16] 0.0, 128
        %1335 = vxpose.xlu0.b32.cont [9/16] 0.0, 128
        %1336 = vxpose.xlu0.b32.cont [10/16] 0.0, 128
        %1337 = vxpose.xlu0.b32.cont [11/16] 0.0, 128
        %1338 = vxpose.xlu0.b32.cont [12/16] 0.0, 128
        %1339 = vxpose.xlu0.b32.cont [13/16] 0.0, 128
        %1340 = vxpose.xlu0.b32.cont [14/16] 0.0, 128
        %1341 = vxpose.xlu0.b32.cont [15/16] 0.0, 128
        %1342 = vxpose.xlu0.b32.end [16/16] 0.0, 128
        %v1343 = vpop.trf.xlu0
        %v1344 = vpop.trf.xlu0
        %v1345 = vpop.trf.xlu0
        %v1346 = vpop.trf.xlu0
        %v1347 = vpop.trf.xlu0
        %v1348 = vpop.trf.xlu0
        %v1349 = vpop.trf.xlu0
        %v1350 = vpop.trf.xlu0
        %v1351 = vpop.trf.xlu0
        %v1352 = vpop.trf.xlu0
        %v1353 = vpop.trf.xlu0
        %v1354 = vpop.trf.xlu0
        %v1355 = vpop.trf.xlu0
        %v1356 = vpop.trf.xlu0
        %v1357 = vpop.trf.xlu0
        %v1358 = vpop.trf.xlu0
        %v1360 = vsel %vm333, %v735, 0
        %v1363 = vsel %vm333, %v736, 0
        %v1366 = vsel %vm333, %v767, 0
        %v1369 = vsel %vm333, %v768, 0
        %v1372 = vsel %vm333, %v799, 0
        %v1375 = vsel %vm333, %v800, 0
        %v1378 = vsel %vm333, %v831, 0
        %v1381 = vsel %vm333, %v832, 0
        %v1384 = vsel %vm333, %v863, 0
        %v1387 = vsel %vm333, %v864, 0
        %v1390 = vsel %vm333, %v895, 0
        %v1393 = vsel %vm333, %v896, 0
        %v1396 = vsel %vm333, %v927, 0
        %v1399 = vsel %vm333, %v928, 0
        %v1402 = vsel %vm333, %v959, 0
        %v1405 = vsel %vm333, %v960, 0
        %v1408 = vsel %vm333, %v991, 0
        %v1411 = vsel %vm333, %v992, 0
        %v1414 = vsel %vm333, %v1023, 0
        %v1417 = vsel %vm333, %v1024, 0
        %v1420 = vsel %vm333, %v1055, 0
        %v1423 = vsel %vm333, %v1056, 0
        %v1426 = vsel %vm333, %v1087, 0
        %v1429 = vsel %vm333, %v1088, 0
        %v1432 = vsel %vm333, %v1119, 0
        %v1435 = vsel %vm333, %v1120, 0
        %v1438 = vsel %vm333, %v1151, 0
        %v1441 = vsel %vm333, %v1152, 0
        %v1444 = vsel %vm333, %v1183, 0
        %v1447 = vsel %vm333, %v1184, 0
        %v1450 = vsel %vm333, %v1215, 0
        %v1453 = vsel %vm333, %v1216, 0
        %v1456 = vsel %vm333, %v1247, 0
        %v1459 = vsel %vm333, %v1248, 0
        %v1462 = vsel %vm333, %v1279, 0
        %v1465 = vsel %vm333, %v1280, 0
        %v1468 = vsel %vm333, %v1311, 0
        %v1471 = vsel %vm333, %v1312, 0
        %v1474 = vsel %vm333, %v1343, 0
        %v1477 = vsel %vm333, %v1344, 0
        %1479 = vmatprep.subr.mxu0 0.0
        %1480 = vmatpush1.msra.mxu0 %v331
        %1481 = vmatprep.subr.mxu0 0.0
        %1482 = vmatpush1.msra.mxu0 %v332
        %1483 = vmatprep.subr.mxu0 0.0
        %1484 = vmatpush1.msra.mxu0 0.0
        %1485 = vmatprep.subr.mxu0 0.0
        %1486 = vmatpush1.msra.mxu0 0.0
        %1487 = vmatprep.subr.mxu0 0.0
        %1488 = vmatpush1.msra.mxu0 0.0
        %1489 = vmatprep.subr.mxu0 0.0
        %1490 = vmatpush1.msra.mxu0 0.0
        %1491 = vmatprep.subr.mxu0 0.0
        %1492 = vmatpush1.msra.mxu0 0.0
        %1493 = vmatprep.subr.mxu0 0.0
        %1494 = vmatpush1.msra.mxu0 0.0
        %1495 = vmatprep.subr.mxu0 0.0
        %1496 = vmatpush1.msra.mxu0 0.0
        %1497 = vmatprep.subr.mxu0 0.0
        %1498 = vmatpush1.msra.mxu0 0.0
        %1499 = vmatprep.subr.mxu0 0.0
        %1500 = vmatpush1.msra.mxu0 0.0
        %1501 = vmatprep.subr.mxu0 0.0
        %1502 = vmatpush1.msra.mxu0 0.0
        %1503 = vmatprep.subr.mxu0 0.0
        %1504 = vmatpush1.msra.mxu0 0.0
        %1505 = vmatprep.subr.mxu0 0.0
        %1506 = vmatpush1.msra.mxu0 0.0
        %1507 = vmatprep.subr.mxu0 0.0
        %1508 = vmatpush1.msra.mxu0 0.0
        %1509 = vmatprep.subr.mxu0 0.0
        %1510 = vmatpush1.msra.mxu0 0.0
        %1511 = vmatprep.subr.mxu0 0.0
        %1512 = vmatpush1.msra.mxu0 0.0
        %1513 = vmatprep.subr.mxu0 0.0
        %1514 = vmatpush1.msra.mxu0 0.0
        %1515 = vmatprep.subr.mxu0 0.0
        %1516 = vmatpush1.msra.mxu0 0.0
        %1517 = vmatprep.subr.mxu0 0.0
        %1518 = vmatpush1.msra.mxu0 0.0
        %1519 = vmatprep.subr.mxu0 0.0
        %1520 = vmatpush1.msra.mxu0 0.0
        %1521 = vmatprep.subr.mxu0 0.0
        %1522 = vmatpush1.msra.mxu0 0.0
        %1523 = vmatprep.subr.mxu0 0.0
        %1524 = vmatpush1.msra.mxu0 0.0
        %1525 = vmatprep.subr.mxu0 0.0
        %1526 = vmatpush1.msra.mxu0 0.0
        %1527 = vmatprep.subr.mxu0 0.0
        %1528 = vmatpush1.msra.mxu0 0.0
        %1529 = vmatprep.subr.mxu0 0.0
        %1530 = vmatpush1.msra.mxu0 0.0
        %1531 = vmatprep.subr.mxu0 0.0
        %1532 = vmatpush1.msra.mxu0 0.0
        %1533 = vmatprep.subr.mxu0 0.0
        %1534 = vmatpush1.msra.mxu0 0.0
        %1535 = vmatprep.subr.mxu0 0.0
        %1536 = vmatpush1.msra.mxu0 0.0
        %1537 = vmatprep.subr.mxu0 0.0
        %1538 = vmatpush1.msra.mxu0 0.0
        %1539 = vmatprep.subr.mxu0 0.0
        %1540 = vmatpush1.msra.mxu0 0.0
        %1541 = vmatprep.subr.mxu0 0.0
        %1542 = vmatpush1.msra.mxu0 0.0
        %1543 = vmatprep.mubr.f32.mxu0 0.0
        %1544 = vmatmul.mubr.f32.gmra.mrb[0].mxu0 %v1360
        %v1545 = vpop.f32.mrb[0].mxu0
        %v1546 = vadd.f32 0.0, %v1545
        %v1547 = vpop.f32.mrb[0].mxu0
        %1548 = vmatprep.mubr.f32.mxu0 0.0
        %1549 = vmatmul.mubr.f32.gmra.mrb[0].mxu0 %v1363
        %v1550 = vpop.f32.mrb[0].mxu0
        %v1551 = vadd.f32 0.0, %v1550
        %v1552 = vpop.f32.mrb[0].mxu0
        %1553 = vmatprep.mubr.f32.mxu0 0.0
        %1554 = vmatmul.mubr.f32.gmra.mrb[0].mxu0 %v1366
        %v1555 = vpop.f32.mrb[0].mxu0
        %v1556 = vadd.f32 0.0, %v1555
        %v1557 = vpop.f32.mrb[0].mxu0
        %1558 = vmatprep.mubr.f32.mxu0 0.0
        %1559 = vmatmul.mubr.f32.gmra.mrb[0].mxu0 %v1369
        %v1560 = vpop.f32.mrb[0].mxu0
        %v1561 = vadd.f32 0.0, %v1560
        %v1562 = vpop.f32.mrb[0].mxu0
        %1563 = vmatprep.mubr.f32.mxu0 0.0
        %1564 = vmatmul.mubr.f32.gmra.mrb[0].mxu0 %v1372
        %v1565 = vpop.f32.mrb[0].mxu0
        %v1566 = vadd.f32 0.0, %v1565
        %v1567 = vpop.f32.mrb[0].mxu0
        %1568 = vmatprep.mubr.f32.mxu0 0.0
        %1569 = vmatmul.mubr.f32.gmra.mrb[0].mxu0 %v1375
        %v1570 = vpop.f32.mrb[0].mxu0
        %v1571 = vadd.f32 0.0, %v1570
        %v1572 = vpop.f32.mrb[0].mxu0
        %1573 = vmatprep.mubr.f32.mxu0 0.0
        %1574 = vmatmul.mubr.f32.gmra.mrb[0].mxu0 %v1378
        %v1575 = vpop.f32.mrb[0].mxu0
        %v1576 = vadd.f32 0.0, %v1575
        %v1577 = vpop.f32.mrb[0].mxu0
        %1578 = vmatprep.mubr.f32.mxu0 0.0
        %1579 = vmatmul.mubr.f32.gmra.mrb[0].mxu0 %v1381
        %v1580 = vpop.f32.mrb[0].mxu0
        %v1581 = vadd.f32 0.0, %v1580
        %v1582 = vpop.f32.mrb[0].mxu0
        %1583 = vmatprep.mubr.f32.mxu0 0.0
        %1584 = vmatmul.mubr.f32.gmra.mrb[0].mxu0 %v1384
        %v1585 = vpop.f32.mrb[0].mxu0
        %v1586 = vadd.f32 0.0, %v1585
        %v1587 = vpop.f32.mrb[0].mxu0
        %1588 = vmatprep.mubr.f32.mxu0 0.0
        %1589 = vmatmul.mubr.f32.gmra.mrb[0].mxu0 %v1387
        %v1590 = vpop.f32.mrb[0].mxu0
        %v1591 = vadd.f32 0.0, %v1590
        %v1592 = vpop.f32.mrb[0].mxu0
        %1593 = vmatprep.mubr.f32.mxu0 0.0
        %1594 = vmatmul.mubr.f32.gmra.mrb[0].mxu0 %v1390
        %v1595 = vpop.f32.mrb[0].mxu0
        %v1596 = vadd.f32 0.0, %v1595
        %v1597 = vpop.f32.mrb[0].mxu0
        %1598 = vmatprep.mubr.f32.mxu0 0.0
        %1599 = vmatmul.mubr.f32.gmra.mrb[0].mxu0 %v1393
        %v1600 = vpop.f32.mrb[0].mxu0
        %v1601 = vadd.f32 0.0, %v1600
        %v1602 = vpop.f32.mrb[0].mxu0
        %1603 = vmatprep.mubr.f32.mxu0 0.0
        %1604 = vmatmul.mubr.f32.gmra.mrb[0].mxu0 %v1396
        %v1605 = vpop.f32.mrb[0].mxu0
        %v1606 = vadd.f32 0.0, %v1605
        %v1607 = vpop.f32.mrb[0].mxu0
        %1608 = vmatprep.mubr.f32.mxu0 0.0
        %1609 = vmatmul.mubr.f32.gmra.mrb[0].mxu0 %v1399
        %v1610 = vpop.f32.mrb[0].mxu0
        %v1611 = vadd.f32 0.0, %v1610
        %v1612 = vpop.f32.mrb[0].mxu0
        %1613 = vmatprep.mubr.f32.mxu0 0.0
        %1614 = vmatmul.mubr.f32.gmra.mrb[0].mxu0 %v1402
        %v1615 = vpop.f32.mrb[0].mxu0
        %v1616 = vadd.f32 0.0, %v1615
        %v1617 = vpop.f32.mrb[0].mxu0
        %1618 = vmatprep.mubr.f32.mxu0 0.0
        %1619 = vmatmul.mubr.f32.gmra.mrb[0].mxu0 %v1405
        %v1620 = vpop.f32.mrb[0].mxu0
        %v1621 = vadd.f32 0.0, %v1620
        %v1622 = vpop.f32.mrb[0].mxu0
        %1623 = vmatprep.mubr.f32.mxu0 0.0
        %1624 = vmatmul.mubr.f32.gmra.mrb[0].mxu0 %v1408
        %v1625 = vpop.f32.mrb[0].mxu0
        %v1626 = vadd.f32 0.0, %v1625
        %v1627 = vpop.f32.mrb[0].mxu0
        %1628 = vmatprep.mubr.f32.mxu0 0.0
        %1629 = vmatmul.mubr.f32.gmra.mrb[0].mxu0 %v1411
        %v1630 = vpop.f32.mrb[0].mxu0
        %v1631 = vadd.f32 0.0, %v1630
        %v1632 = vpop.f32.mrb[0].mxu0
        %1633 = vmatprep.mubr.f32.mxu0 0.0
        %1634 = vmatmul.mubr.f32.gmra.mrb[0].mxu0 %v1414
        %v1635 = vpop.f32.mrb[0].mxu0
        %v1636 = vadd.f32 0.0, %v1635
        %v1637 = vpop.f32.mrb[0].mxu0
        %1638 = vmatprep.mubr.f32.mxu0 0.0
        %1639 = vmatmul.mubr.f32.gmra.mrb[0].mxu0 %v1417
        %v1640 = vpop.f32.mrb[0].mxu0
        %v1641 = vadd.f32 0.0, %v1640
        %v1642 = vpop.f32.mrb[0].mxu0
        %1643 = vmatprep.mubr.f32.mxu0 0.0
        %1644 = vmatmul.mubr.f32.gmra.mrb[0].mxu0 %v1420
        %v1645 = vpop.f32.mrb[0].mxu0
        %v1646 = vadd.f32 0.0, %v1645
        %v1647 = vpop.f32.mrb[0].mxu0
        %1648 = vmatprep.mubr.f32.mxu0 0.0
        %1649 = vmatmul.mubr.f32.gmra.mrb[0].mxu0 %v1423
        %v1650 = vpop.f32.mrb[0].mxu0
        %v1651 = vadd.f32 0.0, %v1650
        %v1652 = vpop.f32.mrb[0].mxu0
        %1653 = vmatprep.mubr.f32.mxu0 0.0
        %1654 = vmatmul.mubr.f32.gmra.mrb[0].mxu0 %v1426
        %v1655 = vpop.f32.mrb[0].mxu0
        %v1656 = vadd.f32 0.0, %v1655
        %v1657 = vpop.f32.mrb[0].mxu0
        %1658 = vmatprep.mubr.f32.mxu0 0.0
        %1659 = vmatmul.mubr.f32.gmra.mrb[0].mxu0 %v1429
        %v1660 = vpop.f32.mrb[0].mxu0
        %v1661 = vadd.f32 0.0, %v1660
        %v1662 = vpop.f32.mrb[0].mxu0
        %1663 = vmatprep.mubr.f32.mxu0 0.0
        %1664 = vmatmul.mubr.f32.gmra.mrb[0].mxu0 %v1432
        %v1665 = vpop.f32.mrb[0].mxu0
        %v1666 = vadd.f32 0.0, %v1665
        %v1667 = vpop.f32.mrb[0].mxu0
        %1668 = vmatprep.mubr.f32.mxu0 0.0
        %1669 = vmatmul.mubr.f32.gmra.mrb[0].mxu0 %v1435
        %v1670 = vpop.f32.mrb[0].mxu0
        %v1671 = vadd.f32 0.0, %v1670
        %v1672 = vpop.f32.mrb[0].mxu0
        %1673 = vmatprep.mubr.f32.mxu0 0.0
        %1674 = vmatmul.mubr.f32.gmra.mrb[0].mxu0 %v1438
        %v1675 = vpop.f32.mrb[0].mxu0
        %v1676 = vadd.f32 0.0, %v1675
        %v1677 = vpop.f32.mrb[0].mxu0
        %1678 = vmatprep.mubr.f32.mxu0 0.0
        %1679 = vmatmul.mubr.f32.gmra.mrb[0].mxu0 %v1441
        %v1680 = vpop.f32.mrb[0].mxu0
        %v1681 = vadd.f32 0.0, %v1680
        %v1682 = vpop.f32.mrb[0].mxu0
        %1683 = vmatprep.mubr.f32.mxu0 0.0
        %1684 = vmatmul.mubr.f32.gmra.mrb[0].mxu0 %v1444
        %v1685 = vpop.f32.mrb[0].mxu0
        %v1686 = vadd.f32 0.0, %v1685
        %v1687 = vpop.f32.mrb[0].mxu0
        %1688 = vmatprep.mubr.f32.mxu0 0.0
        %1689 = vmatmul.mubr.f32.gmra.mrb[0].mxu0 %v1447
        %v1690 = vpop.f32.mrb[0].mxu0
        %v1691 = vadd.f32 0.0, %v1690
        %v1692 = vpop.f32.mrb[0].mxu0
        %1693 = vmatprep.mubr.f32.mxu0 0.0
        %1694 = vmatmul.mubr.f32.gmra.mrb[0].mxu0 %v1450
        %v1695 = vpop.f32.mrb[0].mxu0
        %v1696 = vadd.f32 0.0, %v1695
        %v1697 = vpop.f32.mrb[0].mxu0
        %1698 = vmatprep.mubr.f32.mxu0 0.0
        %1699 = vmatmul.mubr.f32.gmra.mrb[0].mxu0 %v1453
        %v1700 = vpop.f32.mrb[0].mxu0
        %v1701 = vadd.f32 0.0, %v1700
        %v1702 = vpop.f32.mrb[0].mxu0
        %1703 = vmatprep.mubr.f32.mxu0 0.0
        %1704 = vmatmul.mubr.f32.gmra.mrb[0].mxu0 %v1456
        %v1705 = vpop.f32.mrb[0].mxu0
        %v1706 = vadd.f32 0.0, %v1705
        %v1707 = vpop.f32.mrb[0].mxu0
        %1708 = vmatprep.mubr.f32.mxu0 0.0
        %1709 = vmatmul.mubr.f32.gmra.mrb[0].mxu0 %v1459
        %v1710 = vpop.f32.mrb[0].mxu0
        %v1711 = vadd.f32 0.0, %v1710
        %v1712 = vpop.f32.mrb[0].mxu0
        %1713 = vmatprep.mubr.f32.mxu0 0.0
        %1714 = vmatmul.mubr.f32.gmra.mrb[0].mxu0 %v1462
        %v1715 = vpop.f32.mrb[0].mxu0
        %v1716 = vadd.f32 0.0, %v1715
        %v1717 = vpop.f32.mrb[0].mxu0
        %1718 = vmatprep.mubr.f32.mxu0 0.0
        %1719 = vmatmul.mubr.f32.gmra.mrb[0].mxu0 %v1465
        %v1720 = vpop.f32.mrb[0].mxu0
        %v1721 = vadd.f32 0.0, %v1720
        %v1722 = vpop.f32.mrb[0].mxu0
        %1723 = vmatprep.mubr.f32.mxu0 0.0
        %1724 = vmatmul.mubr.f32.gmra.mrb[0].mxu0 %v1468
        %v1725 = vpop.f32.mrb[0].mxu0
        %v1726 = vadd.f32 0.0, %v1725
        %v1727 = vpop.f32.mrb[0].mxu0
        %1728 = vmatprep.mubr.f32.mxu0 0.0
        %1729 = vmatmul.mubr.f32.gmra.mrb[0].mxu0 %v1471
        %v1730 = vpop.f32.mrb[0].mxu0
        %v1731 = vadd.f32 0.0, %v1730
        %v1732 = vpop.f32.mrb[0].mxu0
        %1733 = vmatprep.mubr.f32.mxu0 0.0
        %1734 = vmatmul.mubr.f32.gmra.mrb[0].mxu0 %v1474
        %v1735 = vpop.f32.mrb[0].mxu0
        %v1736 = vadd.f32 0.0, %v1735
        %v1737 = vpop.f32.mrb[0].mxu0
        %1738 = vmatprep.mubr.f32.mxu0 0.0
        %1739 = vmatmul.mubr.f32.gmra.mrb[0].mxu0 %v1477
        %v1740 = vpop.f32.mrb[0].mxu0
        %v1741 = vadd.f32 0.0, %v1740
        %v1742 = vpop.f32.mrb[0].mxu0
        %1743 = vdwg.mxu0
        %v1744 = vmul.f32 %v1546, %v1546
        %v1745 = vmul.f32 %v1551, %v1551
        %v1746 = vmul.f32 %v1556, %v1556
        %v1747 = vmul.f32 %v1561, %v1561
        %v1748 = vmul.f32 %v1566, %v1566
        %v1749 = vmul.f32 %v1571, %v1571
        %v1750 = vmul.f32 %v1576, %v1576
        %v1751 = vmul.f32 %v1581, %v1581
        %v1752 = vmul.f32 %v1586, %v1586
        %v1753 = vmul.f32 %v1591, %v1591
        %v1754 = vmul.f32 %v1596, %v1596
        %v1755 = vmul.f32 %v1601, %v1601
        %v1756 = vmul.f32 %v1606, %v1606
        %v1757 = vmul.f32 %v1611, %v1611
        %v1758 = vmul.f32 %v1616, %v1616
        %v1759 = vmul.f32 %v1621, %v1621
        %v1760 = vmul.f32 %v1546, %v1586
        %v1761 = vmul.f32 %v1551, %v1591
        %v1762 = vmul.f32 %v1556, %v1596
        %v1763 = vmul.f32 %v1561, %v1601
        %v1764 = vmul.f32 %v1566, %v1606
        %v1765 = vmul.f32 %v1571, %v1611
        %v1766 = vmul.f32 %v1576, %v1616
        %v1767 = vmul.f32 %v1581, %v1621
        %v1768 = vsub.f32 %v1626, %v1744
        %v1769 = vsub.f32 %v1631, %v1745
        %v1770 = vsub.f32 %v1636, %v1746
        %v1771 = vsub.f32 %v1641, %v1747
        %v1772 = vsub.f32 %v1646, %v1748
        %v1773 = vsub.f32 %v1651, %v1749
        %v1774 = vsub.f32 %v1656, %v1750
        %v1775 = vsub.f32 %v1661, %v1751
        %v1776 = vsub.f32 %v1666, %v1752
        %v1777 = vsub.f32 %v1671, %v1753
        %v1778 = vsub.f32 %v1676, %v1754
        %v1779 = vsub.f32 %v1681, %v1755
        %v1780 = vsub.f32 %v1686, %v1756
        %v1781 = vsub.f32 %v1691, %v1757
        %v1782 = vsub.f32 %v1696, %v1758
        %v1783 = vsub.f32 %v1701, %v1759
        %v1784 = vsub.f32 %v1706, %v1760
        %v1785 = vsub.f32 %v1711, %v1761
        %v1786 = vsub.f32 %v1716, %v1762
        %v1787 = vsub.f32 %v1721, %v1763
        %v1788 = vsub.f32 %v1726, %v1764
        %v1789 = vsub.f32 %v1731, %v1765
        %v1790 = vsub.f32 %v1736, %v1766
        %v1791 = vsub.f32 %v1741, %v1767
        %v1792 = vmul.f32 %v1760, 2.0
        %v1793 = vmul.f32 %v1761, 2.0
        %v1794 = vmul.f32 %v1762, 2.0
        %v1795 = vmul.f32 %v1763, 2.0
        %v1796 = vmul.f32 %v1764, 2.0
        %v1797 = vmul.f32 %v1765, 2.0
        %v1798 = vmul.f32 %v1766, 2.0
        %v1799 = vmul.f32 %v1767, 2.0
        %v1800 = vadd.f32 %v1792, 0.0001
        %v1801 = vadd.f32 %v1793, 0.0001
        %v1802 = vadd.f32 %v1794, 0.0001
        %v1803 = vadd.f32 %v1795, 0.0001
        %v1804 = vadd.f32 %v1796, 0.0001
        %v1805 = vadd.f32 %v1797, 0.0001
        %v1806 = vadd.f32 %v1798, 0.0001
        %v1807 = vadd.f32 %v1799, 0.0001
        %v1808 = vmul.f32 %v1784, 2.0
        %v1809 = vmul.f32 %v1785, 2.0
        %v1810 = vmul.f32 %v1786, 2.0
        %v1811 = vmul.f32 %v1787, 2.0
        %v1812 = vmul.f32 %v1788, 2.0
        %v1813 = vmul.f32 %v1789, 2.0
        %v1814 = vmul.f32 %v1790, 2.0
        %v1815 = vmul.f32 %v1791, 2.0
        %v1816 = vadd.f32 %v1808, 0.0009
        %v1817 = vadd.f32 %v1809, 0.0009
        %v1818 = vadd.f32 %v1810, 0.0009
        %v1819 = vadd.f32 %v1811, 0.0009
        %v1820 = vadd.f32 %v1812, 0.0009
        %v1821 = vadd.f32 %v1813, 0.0009
        %v1822 = vadd.f32 %v1814, 0.0009
        %v1823 = vadd.f32 %v1815, 0.0009
        %v1824 = vmul.f32 %v1800, %v1816
        %v1825 = vmul.f32 %v1801, %v1817
        %v1826 = vmul.f32 %v1802, %v1818
        %v1827 = vmul.f32 %v1803, %v1819
        %v1828 = vmul.f32 %v1804, %v1820
        %v1829 = vmul.f32 %v1805, %v1821
        %v1830 = vmul.f32 %v1806, %v1822
        %v1831 = vmul.f32 %v1807, %v1823
        %v1832 = vadd.f32 %v1744, %v1752
        %v1833 = vadd.f32 %v1745, %v1753
        %v1834 = vadd.f32 %v1746, %v1754
        %v1835 = vadd.f32 %v1747, %v1755
        %v1836 = vadd.f32 %v1748, %v1756
        %v1837 = vadd.f32 %v1749, %v1757
        %v1838 = vadd.f32 %v1750, %v1758
        %v1839 = vadd.f32 %v1751, %v1759
        %v1840 = vadd.f32 %v1832, 0.0001
        %v1841 = vadd.f32 %v1833, 0.0001
        %v1842 = vadd.f32 %v1834, 0.0001
        %v1843 = vadd.f32 %v1835, 0.0001
        %v1844 = vadd.f32 %v1836, 0.0001
        %v1845 = vadd.f32 %v1837, 0.0001
        %v1846 = vadd.f32 %v1838, 0.0001
        %v1847 = vadd.f32 %v1839, 0.0001
        %v1848 = vadd.f32 %v1768, %v1776
        %v1849 = vadd.f32 %v1769, %v1777
        %v1850 = vadd.f32 %v1770, %v1778
        %v1851 = vadd.f32 %v1771, %v1779
        %v1852 = vadd.f32 %v1772, %v1780
        %v1853 = vadd.f32 %v1773, %v1781
        %v1854 = vadd.f32 %v1774, %v1782
        %v1855 = vadd.f32 %v1775, %v1783
        %v1856 = vadd.f32 %v1848, 0.0009
        %v1857 = vadd.f32 %v1849, 0.0009
        %v1858 = vadd.f32 %v1850, 0.0009
        %v1859 = vadd.f32 %v1851, 0.0009
        %v1860 = vadd.f32 %v1852, 0.0009
        %v1861 = vadd.f32 %v1853, 0.0009
        %v1862 = vadd.f32 %v1854, 0.0009
        %v1863 = vadd.f32 %v1855, 0.0009
        %v1864 = vmul.f32 %v1840, %v1856
        %v1865 = vmul.f32 %v1841, %v1857
        %v1866 = vmul.f32 %v1842, %v1858
        %v1867 = vmul.f32 %v1843, %v1859
        %v1868 = vmul.f32 %v1844, %v1860
        %v1869 = vmul.f32 %v1845, %v1861
        %v1870 = vmul.f32 %v1846, %v1862
        %v1871 = vmul.f32 %v1847, %v1863
        %v1872 = vrcp.pop %v1864
        %v1873 = vmul.f32 %v1824, %v1872
        %v1874 = vrcp.pop %v1865
        %v1875 = vmul.f32 %v1825, %v1874
        %v1876 = vrcp.pop %v1866
        %v1877 = vmul.f32 %v1826, %v1876
        %v1878 = vrcp.pop %v1867
        %v1879 = vmul.f32 %v1827, %v1878
        %v1880 = vrcp.pop %v1868
        %v1881 = vmul.f32 %v1828, %v1880
        %v1882 = vrcp.pop %v1869
        %v1883 = vmul.f32 %v1829, %v1882
        %v1884 = vrcp.pop %v1870
        %v1885 = vmul.f32 %v1830, %v1884
        %v1886 = vrcp.pop %v1871
        %v1887 = vmul.f32 %v1831, %v1886
        %v1888 = vsel %vm333, %v1873, 0.0
        %v1889 = vsel %vm333, %v1875, 0.0
        %v1890 = vadd.f32 %v1888, %v1889
        %v1891 = vsel %vm333, %v1877, 0.0
        %v1892 = vadd.f32 %v1890, %v1891
        %v1893 = vsel %vm333, %v1879, 0.0
        %v1894 = vadd.f32 %v1892, %v1893
        %v1895 = vsel %vm333, %v1881, 0.0
        %v1896 = vadd.f32 %v1894, %v1895
        %v1897 = vsel %vm333, %v1883, 0.0
        %v1898 = vadd.f32 %v1896, %v1897
        %v1899 = vsel %vm333, %v1885, 0.0
        %v1900 = vadd.f32 %v1898, %v1899
        %v1901 = vsel %vm333, %v1887, 0.0
        %v1902 = vadd.f32 %v1900, %v1901
        %1903 = vadd.xlane.f32.xlu0 %v1902
        %v1904 = vpop.xlane.xlu0 %1903
        %v1905 = vrot.slane %v1904, 4
        %v1906 = vadd.f32 %v1904, %v1905
        %v1907 = vrot.slane %v1906, 2
        %v1908 = vadd.f32 %v1906, %v1907
        %v1909 = vrot.slane %v1908, 1
        %v1910 = vadd.f32 %v1908, %v1909
        %s1911 = vtos %v1910
        %v1912 = vstv %s1911
        %1913 = vst [vmem:[%s286] sm:$0xff] %v1912
        %s1914 = sand.u32 %s127, 1
        %s1915 = scalar_lea.sflag [#allocation4], %s1914
        %s1916 = sand.u32 %s127, 1
        %s1917 = smul.addr %s1916, 8
        %s1918 = scalar_lea.vmem [#allocation10], %s1917
        // Predicated region
        $region53: #{tpu_custom_call.1} parent=35 // pred_check
          %p1919 = pneg %p137
        $region54: #{tpu_custom_call.1} parent=35 // pred_check_branch
          %1921 = sbr.rel (%p1919) target = $region56
        $region55: #{tpu_custom_call.1} parent=35 // pred_region
          %s1923 = ssub.s32 128, 128
          %1924 = vsyncadd %s1915, %s1923
          %s1925 = smul.addr %s25, 128
          %s1926 = scalar_lea.hbm %s4, %s1925
          %s1928 = sshll.u32 %s1918, 4
          %s1929 = int_to_ptr.vmem [resolvable:$true] %s1928
          %1931 = dma.vmem_to_hbm [thread:$0]  %s1929, 128, %s1926, %s1915
        $region56: #{tpu_custom_call.1} parent=35 // pred_fallthru
          _
      $region36: #{tpu_custom_call.1} parent=5 // pred_fallthru
        _
      %p1932 = scmp.le.s32.totalorder 2, %s20
      // Predicated region
      $region57: #{tpu_custom_call.1} parent=5 // pred_check
        %p1933 = pneg %p1932
      $region58: #{tpu_custom_call.1} parent=5 // pred_check_branch
        %1935 = sbr.rel (%p1933) target = $region60
      $region59: #{tpu_custom_call.1} parent=5 // pred_region
        %s1936 = ssub.s32 %s20, 2
        // Predicated region
        $region61: #{tpu_custom_call.1} parent=59 // pred_check
          %p1937 = pneg %p143
        $region62: #{tpu_custom_call.1} parent=59 // pred_check_branch
          %1939 = sbr.rel (%p1937) target = $region64
        $region63: #{tpu_custom_call.1} parent=59 // pred_region
          %s1940 = sand.u32 %s128, 1
          %s1941 = scalar_lea.sflag [#allocation4], %s1940
          %s1942 = sand.u32 %s128, 1
          %s1943 = smul.addr %s1942, 8
          %s1944 = scalar_lea.vmem [#allocation10], %s1943
          %1945 = dma.done %s1941, 128
        $region64: #{tpu_custom_call.1} parent=59 // pred_fallthru
          _
      $region60: #{tpu_custom_call.1} parent=5 // pred_fallthru
        _
    $region6: #{tpu_custom_call.1} parent=1 // loop_footer
      %s24 = sadd.s32 1, %s20
    $region7: #{tpu_custom_call.1} parent=1 // loop_footer_branch
      %19 = sbr.rel target = $region3
    $region8: #{tpu_custom_call.1} parent=1 // loop_exit
      _
    %1946 = vsyncpa [#allocation3], 1
    %s1947 = scalar_lea.sflag [#allocation3], 1
    %1948 = vsyncpa %s1947, 1
    %1949 = vsyncpa [#allocation6], 1
    %s1950 = scalar_lea.sflag [#allocation6], 1
    %1951 = vsyncpa %s1950, 1
    %1952 = vsyncpa [#allocation9], 1
    %1953 = vsyncpa [#allocation4], 1
    %s1954 = scalar_lea.sflag [#allocation4], 1
    %1955 = vsyncpa %s1954, 1

</llo_original>
